<compile_context>
chip_gen: v6e
topology: v6e:2x2x1
jax: 0.10.0
libtpu: 0.0.40
codegen_flags: <defaults>
</compile_context>

<pallas_src>
import math
import functools

import jax
import jax.numpy as jnp
from jax.experimental import pallas as pl
from jax.experimental.pallas import tpu as pltpu


def _flash_attn_kernel(q_ref, k_ref, v_ref, wo_ref, bo_ref, o_ref,
                       m_sc, l_sc, acc_sc, *, recip_approx):
    """One program = one (batch, q-tile); grid axis 2 walks KV tiles (innermost)."""
    ki = pl.program_id(2)

    # ---- init: reset online-softmax state once per (batch, q-tile).
    @pl.when(ki == 0)
    def _init():
        m_sc[...] = jnp.full(m_sc.shape, -jnp.inf, m_sc.dtype)
        l_sc[...] = jnp.zeros(l_sc.shape, l_sc.dtype)
        acc_sc[...] = jnp.zeros(acc_sc.shape, acc_sc.dtype)

    q = q_ref[0]                                        # (h, TQ, d_k), pre-scaled
    k = k_ref[0]                                        # (h, TK, d_k)
    v = v_ref[0]                                        # (h, TK, d_v)

    # Scores, all heads batched, contracting d_k (no explicit K^T, no relayout).
    # TODO(synk): if bundle dumps show vld/vst spills at large h, chunk heads with
    # lax.fori_loop(..., unroll=True) to bound the live (h, TQ, TK) range.
    s = jnp.einsum("hqd,hkd->hqk", q, k,
                   preferred_element_type=jnp.float32)  # (h, TQ, TK), f32
    # TODO(synk): mask=None path only; 'causal'/user masks (-1e9 fill) go here.

    # ---- online softmax update (running max / sum, unnormalized accumulator).
    m_prev = m_sc[...]
    m_new = jnp.maximum(m_prev, jnp.max(s, axis=-1, keepdims=True))  # (h, TQ, 1)
    alpha = jnp.exp(m_prev - m_new)
    p = jnp.exp(s - m_new)                                           # (h, TQ, TK)
    l_sc[...] = alpha * l_sc[...] + jnp.sum(p, axis=-1, keepdims=True)
    acc_sc[...] = alpha * acc_sc[...] + jnp.einsum(
        "hqk,hkd->hqd", p.astype(v.dtype), v,
        preferred_element_type=jnp.float32)                          # (h, TQ, d_v)
    m_sc[...] = m_new

    # ---- finalize: normalize once per q-tile, reassemble heads, output projection.
    @pl.when(ki == pl.num_programs(2) - 1)
    def _finalize():
        if recip_approx:
            ctx = acc_sc[...] * pl.reciprocal(l_sc[...], approx=True)
        else:
            ctx = acc_sc[...] / l_sc[...]               # exact; once per q-tile
        tq = ctx.shape[1]
        ctx = jnp.swapaxes(ctx, 0, 1).reshape(tq, -1)   # (TQ, h*d_v), once per q-tile
        out = jnp.dot(ctx.astype(wo_ref.dtype), wo_ref[...],
                      preferred_element_type=jnp.float32) + bo_ref[...]
        o_ref[0] = out.astype(o_ref.dtype)


def multi_head_attention(x, params, *, h, d_k, d_v,
                         block_q=128, block_kv=256,
                         compute_dtype=jnp.bfloat16,
                         approx_recip=False,
                         vmem_limit_bytes=48 * 1024 * 1024):
    """x: (B, L, d_model). params: f32 weights/biases with weights in (in, out) layout
    (transpose of PyTorch nn.Linear). compute_dtype drives the MXU operand dtype;
    accumulation / softmax / biases stay f32."""
    B, L, D = x.shape
    hdk, hdv = h * d_k, h * d_v

    # Shape contract of the PyTorch module.
    assert D % h == 0 and d_k == D // h, "d_model must be divisible by h"
    assert params["wq"].shape == (D, hdk) and params["wk"].shape == (D, hdk)
    assert params["wv"].shape == (D, hdv) and params["wo"].shape == (hdv, D)

    block_q = min(block_q, L)
    block_kv = min(block_kv, L)
    assert L % block_q == 0 and L % block_kv == 0, "seq_len must tile evenly"
    n_q, n_kv = L // block_q, L // block_kv

    # ---- Stage 1: projections in XLA (near-peak MXU), head-major, computed ONCE.
    xc = x.astype(compute_dtype)
    scale = 1.0 / math.sqrt(d_k)

    def proj(w_name, b_name):
        y = jnp.dot(xc, params[w_name].astype(compute_dtype),
                    preferred_element_type=jnp.float32)
        return y + params[b_name].astype(jnp.float32)

    q = (proj("wq", "bq") * scale).reshape(B, L, h, d_k)
    k = proj("wk", "bk").reshape(B, L, h, d_k)
    v = proj("wv", "bv").reshape(B, L, h, d_v)
    q = q.transpose(0, 2, 1, 3).astype(compute_dtype)   # (B, h, L, d_k)
    k = k.transpose(0, 2, 1, 3).astype(compute_dtype)   # (B, h, L, d_k)
    v = v.transpose(0, 2, 1, 3).astype(compute_dtype)   # (B, h, L, d_v)

    wo = params["wo"].astype(compute_dtype)             # (h*d_v, D)
    bo = params["bo"].reshape(1, D).astype(jnp.float32)

    # ---- Stage 2: fused flash attention + output projection (Pallas).
    itemsize = jnp.dtype(compute_dtype).itemsize
    flops = int(2 * B * h * L * L * d_k      # Q @ K^T
                + 2 * B * h * L * L * d_v    # P @ V
                + 2 * B * L * hdv * D)       # output projection
    transcendentals = int(B * h * L * L + B * h * L * n_kv)
    bytes_accessed = int((B * h * L * d_k * 2 + B * h * L * d_v + hdv * D) * itemsize
                         + D * 4 + B * L * D * jnp.dtype(x.dtype).itemsize)

    # Resident (constant index map) blocks: single-buffered — revisited, never refetched.
    const1 = lambda shape: pl.BlockSpec(shape, lambda b, qi, ki: (0,) * len(shape),
                                        pipeline_mode=pl.Buffered(1))

    kernel = functools.partial(_flash_attn_kernel, recip_approx=approx_recip)

    out = pl.pallas_call(
        kernel,
        out_shape=jax.ShapeDtypeStruct((B, L, D), x.dtype),
        grid=(B, n_q, n_kv),
        in_specs=[
            # Q tile: constant in ki -> single buffer is enough.
            pl.BlockSpec((1, h, block_q, d_k), lambda b, qi, ki: (b, 0, qi, 0),
                         pipeline_mode=pl.Buffered(1)),
            # K / V tiles: change every (innermost) ki step -> keep double buffering.
            pl.BlockSpec((1, h, block_kv, d_k), lambda b, qi, ki: (b, 0, ki, 0)),
            pl.BlockSpec((1, h, block_kv, d_v), lambda b, qi, ki: (b, 0, ki, 0)),
            const1((hdv, D)),   # W_O
            const1((1, D)),     # b_O
        ],
        out_specs=pl.BlockSpec((1, block_q, D), lambda b, qi, ki: (b, qi, 0)),
        scratch_shapes=[
            pltpu.VMEM((h, block_q, 1), jnp.float32),    # running max
            pltpu.VMEM((h, block_q, 1), jnp.float32),    # running sum
            pltpu.VMEM((h, block_q, d_v), jnp.float32),  # unnormalized context
        ],
        compiler_params=pltpu.CompilerParams(
            dimension_semantics=("parallel", "parallel", "arbitrary"),
            vmem_limit_bytes=vmem_limit_bytes),
        cost_estimate=pl.CostEstimate(flops=flops,
                                      transcendentals=transcendentals,
                                      bytes_accessed=bytes_accessed),
    )(q, k, v, wo, bo)
    return out


def _reference(x, params, *, h, d_k, d_v):
    """Pure-JAX re-implementation of the PyTorch forward (mask=None), f32."""
    B, L, D = x.shape
    q = x @ params["wq"] + params["bq"]
    k = x @ params["wk"] + params["bk"]
    v = x @ params["wv"] + params["bv"]
    q = q.reshape(B, L, h, d_k).transpose(0, 2, 1, 3)
    k = k.reshape(B, L, h, d_k).transpose(0, 2, 1, 3)
    v = v.reshape(B, L, h, d_v).transpose(0, 2, 1, 3)
    scores = jnp.einsum("bhqd,bhkd->bhqk", q, k) / math.sqrt(d_k)
    a = jax.nn.softmax(scores, axis=-1)
    out = jnp.einsum("bhqk,bhkd->bhqd", a, v)
    out = out.transpose(0, 2, 1, 3).reshape(B, L, h * d_v)
    return out @ params["wo"] + params["bo"]


if __name__ == "__main__":
    # Small, module-consistent shapes.
    B, L, d_model, h = 2, 8, 32, 4
    d_k = d_model // h
    d_v = d_k

    key = jax.random.PRNGKey(0)
    kx, kx2, kwq, kbq, kwk, kbk, kwv, kbv, kwo, kbo = jax.random.split(key, 10)

    def init(k, shape, fan_in):
        bound = 1.0 / math.sqrt(fan_in)
        return jax.random.uniform(k, shape, jnp.float32, -bound, bound)

    params = {
        "wq": init(kwq, (d_model, h * d_k), d_model),
        "bq": init(kbq, (h * d_k,), d_model),
        "wk": init(kwk, (d_model, h * d_k), d_model),
        "bk": init(kbk, (h * d_k,), d_model),
        "wv": init(kwv, (d_model, h * d_v), d_model),
        "bv": init(kbv, (h * d_v,), d_model),
        "wo": init(kwo, (h * d_v, d_model), h * d_v),
        "bo": init(kbo, (d_model,), h * d_v),
    }

    # --- f32 MXU path, single (q, kv) tile per batch element, exact normalization.
    x = jax.random.normal(kx, (B, L, d_model), jnp.float32)
    out = jax.block_until_ready(
        multi_head_attention(x, params, h=h, d_k=d_k, d_v=d_v,
                             compute_dtype=jnp.float32))
    ref = _reference(x, params, h=h, d_k=d_k, d_v=d_v)
    assert out.shape == (B, L, d_model)
    assert jnp.allclose(out, ref, atol=2e-3, rtol=2e-3), "f32 mismatch vs reference"

    # --- f32 path with real tiling: 2 query tiles x 2 KV tiles (exercises the
    # online-softmax accumulation across KV grid steps).
    L2 = 16
    x2 = jax.random.normal(kx2, (B, L2, d_model), jnp.float32)
    out2 = jax.block_until_ready(
        multi_head_attention(x2, params, h=h, d_k=d_k, d_v=d_v,
                             block_q=8, block_kv=8, compute_dtype=jnp.float32))
    ref2 = _reference(x2, params, h=h, d_k=d_k, d_v=d_v)
    assert out2.shape == (B, L2, d_model)
    assert jnp.allclose(out2, ref2, atol=2e-3, rtol=2e-3), "tiled f32 mismatch"

    # --- default bf16 MXU path (f32 accumulation / f32 softmax), looser tolerance.
    out_bf16 = jax.block_until_ready(
        multi_head_attention(x2, params, h=h, d_k=d_k, d_v=d_v,
                             block_q=8, block_kv=8))
    assert jnp.allclose(out_bf16, ref2, atol=5e-2, rtol=5e-2), "bf16 mismatch"

    print("KERNEL_OK")
</pallas_src>

<mosaic_0001>
module attributes {stable_mosaic.version = 11 : i64} {
  func.func @_flash_attn_kernel(%arg0: i32, %arg1: i32, %arg2: i32, %arg3: memref<1x4x8x8xf32, #tpu.memory_space<vmem>>, %arg4: memref<1x4x8x8xf32, #tpu.memory_space<vmem>>, %arg5: memref<1x4x8x8xf32, #tpu.memory_space<vmem>>, %arg6: memref<32x32xf32, #tpu.memory_space<vmem>>, %arg7: memref<1x32xf32, #tpu.memory_space<vmem>>, %arg8: memref<1x8x32xf32, #tpu.memory_space<vmem>>, %arg9: memref<4x8x1xf32, #tpu.memory_space<vmem>>, %arg10: memref<4x8x1xf32, #tpu.memory_space<vmem>>, %arg11: memref<4x8x8xf32, #tpu.memory_space<vmem>>) attributes {dimension_semantics = [#tpu.dimension_semantics<parallel>, #tpu.dimension_semantics<parallel>, #tpu.dimension_semantics<arbitrary>], iteration_bounds = array<i64: 2, 1, 1>, scalar_prefetch = 0 : i64, scratch_operands = 3 : i64, tpu.core_type = #tpu.core_type<tc>, window_params = [{pipeline_mode = #tpu.pipeline_mode<synchronous>, transform_indices = @transform_0, window_bounds = array<i64: 1, 4, 8, 8>}, {transform_indices = @transform_1, window_bounds = array<i64: 1, 4, 8, 8>}, {transform_indices = @transform_2, window_bounds = array<i64: 1, 4, 8, 8>}, {pipeline_mode = #tpu.pipeline_mode<synchronous>, transform_indices = @transform_3, window_bounds = array<i64: 32, 32>}, {pipeline_mode = #tpu.pipeline_mode<synchronous>, transform_indices = @transform_4, window_bounds = array<i64: 1, 32>}, {transform_indices = @transform_5, window_bounds = array<i64: 1, 8, 32>}]} {
    %c0_i32 = arith.constant 0 : i32
    %0 = arith.cmpi eq, %arg2, %c0_i32 : i32
    %1 = arith.extui %0 : i1 to i32
    %c0_i32_0 = arith.constant 0 : i32
    %2 = arith.cmpi ne, %1, %c0_i32_0 : i32
    scf.if %2 {
      %cst_35 = arith.constant 0xFF800000 : f32
      %35 = vector.broadcast %cst_35 : f32 to vector<4x8x1xf32>
      %c0_36 = arith.constant 0 : index
      %c0_37 = arith.constant 0 : index
      %c0_38 = arith.constant 0 : index
      %36 = vector.load %arg9[%c0_36, %c0_37, %c0_38] : memref<4x8x1xf32, #tpu.memory_space<vmem>>, vector<4x8x1xf32>
      tpu.vector_store %arg9[%c0_36, %c0_37, %c0_38], %35 {strides = array<i32>} : memref<4x8x1xf32, #tpu.memory_space<vmem>>, vector<4x8x1xf32>,
      %cst_39 = arith.constant 0.000000e+00 : f32
      %37 = vector.broadcast %cst_39 : f32 to vector<4x8x1xf32>
      %c0_40 = arith.constant 0 : index
      %c0_41 = arith.constant 0 : index
      %c0_42 = arith.constant 0 : index
      %38 = vector.load %arg10[%c0_40, %c0_41, %c0_42] : memref<4x8x1xf32, #tpu.memory_space<vmem>>, vector<4x8x1xf32>
      tpu.vector_store %arg10[%c0_40, %c0_41, %c0_42], %37 {strides = array<i32>} : memref<4x8x1xf32, #tpu.memory_space<vmem>>, vector<4x8x1xf32>,
      %cst_43 = arith.constant 0.000000e+00 : f32
      %39 = vector.broadcast %cst_43 : f32 to vector<4x8x8xf32>
      %c0_44 = arith.constant 0 : index
      %c0_45 = arith.constant 0 : index
      %c0_46 = arith.constant 0 : index
      %40 = vector.load %arg11[%c0_44, %c0_45, %c0_46] : memref<4x8x8xf32, #tpu.memory_space<vmem>>, vector<4x8x8xf32>
      tpu.vector_store %arg11[%c0_44, %c0_45, %c0_46], %39 {strides = array<i32>} : memref<4x8x8xf32, #tpu.memory_space<vmem>>, vector<4x8x8xf32>,
    } else {
    }
    %c0 = arith.constant 0 : index
    %c0_1 = arith.constant 0 : index
    %c0_2 = arith.constant 0 : index
    %c0_3 = arith.constant 0 : index
    %3 = vector.load %arg3[%c0, %c0_1, %c0_2, %c0_3] : memref<1x4x8x8xf32, #tpu.memory_space<vmem>>, vector<1x4x8x8xf32>
    %4 = vector.shape_cast %3 : vector<1x4x8x8xf32> to vector<4x8x8xf32>
    %c0_4 = arith.constant 0 : index
    %c0_5 = arith.constant 0 : index
    %c0_6 = arith.constant 0 : index
    %c0_7 = arith.constant 0 : index
    %5 = vector.load %arg4[%c0_4, %c0_5, %c0_6, %c0_7] : memref<1x4x8x8xf32, #tpu.memory_space<vmem>>, vector<1x4x8x8xf32>
    %6 = vector.shape_cast %5 : vector<1x4x8x8xf32> to vector<4x8x8xf32>
    %c0_8 = arith.constant 0 : index
    %c0_9 = arith.constant 0 : index
    %c0_10 = arith.constant 0 : index
    %c0_11 = arith.constant 0 : index
    %7 = vector.load %arg5[%c0_8, %c0_9, %c0_10, %c0_11] : memref<1x4x8x8xf32, #tpu.memory_space<vmem>>, vector<1x4x8x8xf32>
    %8 = vector.shape_cast %7 : vector<1x4x8x8xf32> to vector<4x8x8xf32>
    "tpu.trace_start"() <{level = 10 : i32, message = "hqd,hkd->hqk"}> : () -> ()
    %cst = arith.constant dense<0.000000e+00> : vector<4x8x8xf32>
    %9 = tpu.matmul %4, %6, %cst {dimension_numbers = #tpu.dot_dimension_numbers<[2], [2], [1], [1], [0, 0, 0, 1, 1, 1], [0], [0]>} : vector<4x8x8xf32>, vector<4x8x8xf32>, vector<4x8x8xf32> -> vector<4x8x8xf32>
    "tpu.trace_stop"() : () -> ()
    %c0_12 = arith.constant 0 : index
    %c0_13 = arith.constant 0 : index
    %c0_14 = arith.constant 0 : index
    %10 = vector.load %arg9[%c0_12, %c0_13, %c0_14] : memref<4x8x1xf32, #tpu.memory_space<vmem>>, vector<4x8x1xf32>
    %cst_15 = arith.constant dense<0xFF800000> : vector<4x8xf32>
    %11 = vector.multi_reduction <maximumf>, %9, %cst_15 [2] : vector<4x8x8xf32> to vector<4x8xf32>
    %12 = vector.shape_cast %11 : vector<4x8xf32> to vector<4x8x1xf32>
    %13 = arith.maximumf %10, %12 : vector<4x8x1xf32>
    %14 = arith.subf %10, %13 : vector<4x8x1xf32>
    %15 = math.exp %14 : vector<4x8x1xf32>
    %16 = vector.broadcast %13 : vector<4x8x1xf32> to vector<4x8x8xf32>
    %17 = arith.subf %9, %16 : vector<4x8x8xf32>
    %18 = math.exp %17 : vector<4x8x8xf32>
    %c0_16 = arith.constant 0 : index
    %c0_17 = arith.constant 0 : index
    %c0_18 = arith.constant 0 : index
    %19 = vector.load %arg10[%c0_16, %c0_17, %c0_18] : memref<4x8x1xf32, #tpu.memory_space<vmem>>, vector<4x8x1xf32>
    %20 = arith.mulf %15, %19 : vector<4x8x1xf32>
    %cst_19 = arith.constant dense<0.000000e+00> : vector<4x8xf32>
    %21 = vector.multi_reduction <add>, %18, %cst_19 [2] : vector<4x8x8xf32> to vector<4x8xf32>
    %22 = vector.shape_cast %21 : vector<4x8xf32> to vector<4x8x1xf32>
    %23 = arith.addf %20, %22 : vector<4x8x1xf32>
    %c0_20 = arith.constant 0 : index
    %c0_21 = arith.constant 0 : index
    %c0_22 = arith.constant 0 : index
    %24 = vector.load %arg10[%c0_20, %c0_21, %c0_22] : memref<4x8x1xf32, #tpu.memory_space<vmem>>, vector<4x8x1xf32>
    tpu.vector_store %arg10[%c0_20, %c0_21, %c0_22], %23 {strides = array<i32>} : memref<4x8x1xf32, #tpu.memory_space<vmem>>, vector<4x8x1xf32>,
    %c0_23 = arith.constant 0 : index
    %c0_24 = arith.constant 0 : index
    %c0_25 = arith.constant 0 : index
    %25 = vector.load %arg11[%c0_23, %c0_24, %c0_25] : memref<4x8x8xf32, #tpu.memory_space<vmem>>, vector<4x8x8xf32>
    %26 = vector.broadcast %15 : vector<4x8x1xf32> to vector<4x8x8xf32>
    %27 = arith.mulf %26, %25 : vector<4x8x8xf32>
    "tpu.trace_start"() <{level = 10 : i32, message = "hqk,hkd->hqd"}> : () -> ()
    %cst_26 = arith.constant dense<0.000000e+00> : vector<4x8x8xf32>
    %28 = tpu.matmul %18, %8, %cst_26 {dimension_numbers = #tpu.dot_dimension_numbers<[2], [1], [1], [2], [0, 0, 0, 1, 1, 2], [0], [0]>} : vector<4x8x8xf32>, vector<4x8x8xf32>, vector<4x8x8xf32> -> vector<4x8x8xf32>
    "tpu.trace_stop"() : () -> ()
    %29 = arith.addf %27, %28 : vector<4x8x8xf32>
    %c0_27 = arith.constant 0 : index
    %c0_28 = arith.constant 0 : index
    %c0_29 = arith.constant 0 : index
    %30 = vector.load %arg11[%c0_27, %c0_28, %c0_29] : memref<4x8x8xf32, #tpu.memory_space<vmem>>, vector<4x8x8xf32>
    tpu.vector_store %arg11[%c0_27, %c0_28, %c0_29], %29 {strides = array<i32>} : memref<4x8x8xf32, #tpu.memory_space<vmem>>, vector<4x8x8xf32>,
    %c0_30 = arith.constant 0 : index
    %c0_31 = arith.constant 0 : index
    %c0_32 = arith.constant 0 : index
    %31 = vector.load %arg9[%c0_30, %c0_31, %c0_32] : memref<4x8x1xf32, #tpu.memory_space<vmem>>, vector<4x8x1xf32>
    tpu.vector_store %arg9[%c0_30, %c0_31, %c0_32], %13 {strides = array<i32>} : memref<4x8x1xf32, #tpu.memory_space<vmem>>, vector<4x8x1xf32>,
    %c0_i32_33 = arith.constant 0 : i32
    %32 = arith.cmpi eq, %arg2, %c0_i32_33 : i32
    %33 = arith.extui %32 : i1 to i32
    %c0_i32_34 = arith.constant 0 : i32
    %34 = arith.cmpi ne, %33, %c0_i32_34 : i32
    scf.if %34 {
      %c0_35 = arith.constant 0 : index
      %c0_36 = arith.constant 0 : index
      %c0_37 = arith.constant 0 : index
      %35 = vector.load %arg11[%c0_35, %c0_36, %c0_37] : memref<4x8x8xf32, #tpu.memory_space<vmem>>, vector<4x8x8xf32>
      %c0_38 = arith.constant 0 : index
      %c0_39 = arith.constant 0 : index
      %c0_40 = arith.constant 0 : index
      %36 = vector.load %arg10[%c0_38, %c0_39, %c0_40] : memref<4x8x1xf32, #tpu.memory_space<vmem>>, vector<4x8x1xf32>
      %37 = vector.broadcast %36 : vector<4x8x1xf32> to vector<4x8x8xf32>
      %38 = arith.divf %35, %37 : vector<4x8x8xf32>
      %39 = tpu.transpose %38, [1, 0, 2] : vector<4x8x8xf32> -> vector<8x4x8xf32>
      %40 = vector.shape_cast %39 : vector<8x4x8xf32> to vector<8x32xf32>
      %c0_41 = arith.constant 0 : index
      %c0_42 = arith.constant 0 : index
      %41 = vector.load %arg6[%c0_41, %c0_42] : memref<32x32xf32, #tpu.memory_space<vmem>>, vector<32x32xf32>
      %cst_43 = arith.constant dense<0.000000e+00> : vector<8x32xf32>
      %42 = tpu.matmul %40, %41, %cst_43 {dimension_numbers = #tpu.dot_dimension_numbers<[1], [0], [0], [1], [0, 0, 1, 1], [], []>} : vector<8x32xf32>, vector<32x32xf32>, vector<8x32xf32> -> vector<8x32xf32>
      %c0_44 = arith.constant 0 : index
      %c0_45 = arith.constant 0 : index
      %43 = vector.load %arg7[%c0_44, %c0_45] : memref<1x32xf32, #tpu.memory_space<vmem>>, vector<1x32xf32>
      %44 = vector.broadcast %43 : vector<1x32xf32> to vector<8x32xf32>
      %45 = arith.addf %42, %44 : vector<8x32xf32>
      %c0_46 = arith.constant 0 : index
      %c0_47 = arith.constant 0 : index
      %c0_48 = arith.constant 0 : index
      %46 = vector.load %arg8[%c0_46, %c0_47, %c0_48] : memref<1x8x32xf32, #tpu.memory_space<vmem>>, vector<1x8x32xf32>
      %47 = vector.shape_cast %46 : vector<1x8x32xf32> to vector<8x32xf32>
      %48 = vector.shape_cast %45 : vector<8x32xf32> to vector<1x8x32xf32>
      tpu.vector_store %arg8[%c0_46, %c0_47, %c0_48], %48 {strides = array<i32>} : memref<1x8x32xf32, #tpu.memory_space<vmem>>, vector<1x8x32xf32>,
    } else {
    }
    return
  }
  func.func @transform_0(%arg0: i32, %arg1: i32, %arg2: i32) -> (i32, i32, i32, i32) {
    %c0_i32 = arith.constant 0 : i32
    %c0_i32_0 = arith.constant 0 : i32
    %c0_i32_1 = arith.constant 0 : i32
    return %arg0, %c0_i32, %arg1, %c0_i32_0 : i32, i32, i32, i32
  }
  func.func @transform_1(%arg0: i32, %arg1: i32, %arg2: i32) -> (i32, i32, i32, i32) {
    %c0_i32 = arith.constant 0 : i32
    %c0_i32_0 = arith.constant 0 : i32
    %c0_i32_1 = arith.constant 0 : i32
    return %arg0, %c0_i32, %arg2, %c0_i32_0 : i32, i32, i32, i32
  }
  func.func @transform_2(%arg0: i32, %arg1: i32, %arg2: i32) -> (i32, i32, i32, i32) {
    %c0_i32 = arith.constant 0 : i32
    %c0_i32_0 = arith.constant 0 : i32
    %c0_i32_1 = arith.constant 0 : i32
    return %arg0, %c0_i32, %arg2, %c0_i32_0 : i32, i32, i32, i32
  }
  func.func @transform_3(%arg0: i32, %arg1: i32, %arg2: i32) -> (i32, i32) {
    %c0_i32 = arith.constant 0 : i32
    %c0_i32_0 = arith.constant 0 : i32
    %c0_i32_1 = arith.constant 0 : i32
    return %c0_i32, %c0_i32_0 : i32, i32
  }
  func.func @transform_4(%arg0: i32, %arg1: i32, %arg2: i32) -> (i32, i32) {
    %c0_i32 = arith.constant 0 : i32
    %c0_i32_0 = arith.constant 0 : i32
    %c0_i32_1 = arith.constant 0 : i32
    return %c0_i32, %c0_i32_0 : i32, i32
  }
  func.func @transform_5(%arg0: i32, %arg1: i32, %arg2: i32) -> (i32, i32, i32) {
    %c0_i32 = arith.constant 0 : i32
    %c0_i32_0 = arith.constant 0 : i32
    return %arg0, %arg1, %c0_i32 : i32, i32, i32
  }
}

</mosaic_0001>

<llo_original>
// kernel: tpu_custom_call.1
$region0: #{tpu_custom_call.1}
  #allocation0 [shape = 'u32[]', space=smem, size = 0x4, offset = 0x4, fixed_abs, tag = 'smem constant byte address 0x4 - core index']
  #allocation1 [shape = 'u32[144,128]{1,0:T(1,128)}', space=vmem, size = 0x12000, scoped, tag = 'internal scratch']
  #allocation2 [shape = 'f32[4,8,1]{2,1,0:T(8,128)}', space=vmem, size = 0x4000, scoped, tag = 'scratch operand']
  #allocation3 [shape = 'f32[4,8,1]{2,1,0:T(8,128)}', space=vmem, size = 0x4000, scoped, tag = 'scratch operand']
  #allocation4 [shape = 'f32[4,8,8]{2,1,0:T(8,128)}', space=vmem, size = 0x4000, scoped, tag = 'scratch operand']
  %s0 = inlined_call_operand.hbm [shape: f32[2,4,8,8], index: 0, kind: input, shape index: {}]
  %s1 = inlined_call_operand.hbm [shape: f32[2,4,8,8], index: 1, kind: input, shape index: {}]
  %s2 = inlined_call_operand.hbm [shape: f32[2,4,8,8], index: 2, kind: input, shape index: {}]
  %s3 = inlined_call_operand.hbm [shape: f32[32,32], index: 3, kind: input, shape index: {}]
  %s4 = inlined_call_operand.vmem [shape: f32[1,32], index: 4, kind: input, shape index: {}]
  %s5 = inlined_call_operand.hbm [shape: f32[2,8,32], index: 5, kind: output, shape index: {}]
  %s6 = sld [smem:[#allocation0]]
  $region77: #{tpu_custom_call.1} parent=0
    _
  %s8 = ssub.s32 1, %s6
  %s9 = scalar_select 0, %s8, %s6
  $region1: #{tpu_custom_call.1} parent=0
    #allocation5 [shape = 'u8[16384]{0}', space=vmem, size = 0x4000, scoped, tag = 'input window, operand 0, single buffered']
    #allocation6 [shape = 's32[2]{0}', space=sflag, size = 0x8, scoped, tag = 'scoped memory for tpu_custom_call.1']
    #allocation7 [shape = 's32[2]{0}', space=sflag, size = 0x8, scoped, tag = 'scoped memory for tpu_custom_call.1']
    #allocation8 [shape = 'u8[32768]{0}', space=vmem, size = 0x8000, scoped, tag = 'input window, operand 1']
    #allocation9 [shape = 's32[2]{0}', space=sflag, size = 0x8, scoped, tag = 'scoped memory for tpu_custom_call.1']
    #allocation10 [shape = 'u8[32768]{0}', space=vmem, size = 0x8000, scoped, tag = 'input window, operand 2']
    #allocation11 [shape = 'u8[16384]{0}', space=vmem, size = 0x4000, scoped, tag = 'input window, operand 3, single buffered']
    #allocation12 [shape = 's32[1]{0}', space=sflag, size = 0x4, scoped, tag = 'scoped memory for tpu_custom_call.1']
    #allocation13 [shape = 'u8[8192]{0}', space=vmem, size = 0x2000, scoped, tag = 'output window, operand 0']
    %10 = vsyncpa [#allocation6], 0
    %11 = vsyncpa [#allocation9], 0
    %s12 = scalar_lea.sflag [#allocation9], 1
    %13 = vsyncpa %s12, 0
    %14 = vsyncpa [#allocation12], 0
    %15 = vsyncpa [#allocation7], 0
    %s16 = scalar_lea.sflag [#allocation7], 1
    %17 = vsyncpa %s16, 0
    loop: start=0, step=1, limit=4
    $region2: #{tpu_custom_call.1} parent=1 // loop_pre_header
      _
    $region3: #{tpu_custom_call.1} parent=1 // loop_header
      %s19 = sphi 0, %s23
      %p20 = scmp.ge.s32.totalorder %s19, 4
      %s26 = sphi 0, %s45
      %s27 = sphi 0, %s41
      %s28 = sphi 0, %s37
      %s29 = sphi 0, %s26
      %s30 = sphi 0, %s27
      %s31 = sphi 0, %s28
      %s32 = sphi 0, %s29
      %s33 = sphi 0, %s30
      %s34 = sphi 0, %s31
      %s50 = sphi 0, %s52
      %s53 = sphi 0, %s50
      %s54 = sphi 0, %s53
      %s70 = sphi 0, %s54
      %s78 = sphi 0, %s80
      %s81 = sphi 0, %s78
      %s82 = sphi 0, %s81
      %s98 = sphi 0, %s82
      %s106 = sphi 0, %s108
      %s109 = sphi 0, %s106
      %s110 = sphi 0, %s109
      %s126 = sphi 0, %s110
      %s130 = sphi 0, %s130
      %s132 = sphi 0, %s130
      %s133 = sphi 0, %s132
      %s147 = sphi 0, %s133
      %s151 = sphi 0, %s151
      %s153 = sphi 0, %s151
      %s154 = sphi 0, %s153
      %s168 = sphi 0, %s154
      %s176 = sphi 0, %s178
      %s179 = sphi 0, %s176
      %s180 = sphi 0, %s179
      %s196 = sphi 0, %s180
    $region4: #{tpu_custom_call.1} parent=1 // loop_header_branch
      %22 = sbr.rel (%p20) target = $region8
    $region5: #{tpu_custom_call.1} parent=1 // loop_body
      %s24 = ssub.s32 %s19, 1
      %s25 = ssub.s32 %s19, 2
      %s35 = sadd.s32 1, %s28
      %p36 = scmp.ge.s32.totalorder %s35, 1
      %s37 = scalar_select %p36, 0, %s35
      %s38 = sadd.s32 1, %s27
      %s39 = scalar_select %p36, %s38, %s27
      %p40 = scmp.ge.s32.totalorder %s39, 1
      %s41 = scalar_select %p40, 0, %s39
      %s42 = sadd.s32 1, %s26
      %s43 = scalar_select %p40, %s42, %s26
      %p44 = scmp.ge.s32.totalorder %s43, 2
      %s45 = scalar_select %p44, 0, %s43
      %s46 = ssub.s32 %s26, %s45
      %s47 = ssub.s32 %s27, %s41
      %s48 = sor.u32 %s46, %s47
      %p49 = scmp.eq.s32.totalorder %s48, 0
      %s51 = sadd.s32 %s50, 1
      %s52 = scalar_select %p49, %s50, %s51
      %p55 = pneg %p49
      %p56 = scmp.eq.s32.totalorder %s19, 1
      %p57 = por %p55, %p56
      %p58 = scmp.ne.s32.totalorder %s50, %s53
      %p59 = scmp.eq.s32.totalorder %s19, 0
      %p60 = por %p58, %p59
      %p61 = scmp.ne.s32.totalorder %s50, %s53
      %p62 = scmp.eq.s32.totalorder %s24, 1
      %p63 = por %p61, %p62
      %p64 = scmp.ne.s32.totalorder %s53, %s54
      %p65 = scmp.eq.s32.totalorder %s24, 0
      %p66 = por %p64, %p65
      %p67 = scmp.ne.s32.totalorder %s53, %s54
      %p68 = scmp.eq.s32.totalorder %s25, 1
      %p69 = por %p67, %p68
      %p71 = scmp.ne.s32.totalorder %s54, %s70
      %p72 = scmp.eq.s32.totalorder %s25, 0
      %p73 = por %p71, %p72
      %s74 = ssub.s32 %s26, %s45
      %s75 = ssub.s32 %s28, %s37
      %s76 = sor.u32 %s74, %s75
      %p77 = scmp.eq.s32.totalorder %s76, 0
      %s79 = sadd.s32 %s78, 1
      %s80 = scalar_select %p77, %s78, %s79
      %p83 = pneg %p77
      %p84 = scmp.eq.s32.totalorder %s19, 1
      %p85 = por %p83, %p84
      %p86 = scmp.ne.s32.totalorder %s78, %s81
      %p87 = scmp.eq.s32.totalorder %s19, 0
      %p88 = por %p86, %p87
      %p89 = scmp.ne.s32.totalorder %s78, %s81
      %p90 = scmp.eq.s32.totalorder %s24, 1
      %p91 = por %p89, %p90
      %p92 = scmp.ne.s32.totalorder %s81, %s82
      %p93 = scmp.eq.s32.totalorder %s24, 0
      %p94 = por %p92, %p93
      %p95 = scmp.ne.s32.totalorder %s81, %s82
      %p96 = scmp.eq.s32.totalorder %s25, 1
      %p97 = por %p95, %p96
      %p99 = scmp.ne.s32.totalorder %s82, %s98
      %p100 = scmp.eq.s32.totalorder %s25, 0
      %p101 = por %p99, %p100
      %s102 = ssub.s32 %s26, %s45
      %s103 = ssub.s32 %s28, %s37
      %s104 = sor.u32 %s102, %s103
      %p105 = scmp.eq.s32.totalorder %s104, 0
      %s107 = sadd.s32 %s106, 1
      %s108 = scalar_select %p105, %s106, %s107
      %p111 = pneg %p105
      %p112 = scmp.eq.s32.totalorder %s19, 1
      %p113 = por %p111, %p112
      %p114 = scmp.ne.s32.totalorder %s106, %s109
      %p115 = scmp.eq.s32.totalorder %s19, 0
      %p116 = por %p114, %p115
      %p117 = scmp.ne.s32.totalorder %s106, %s109
      %p118 = scmp.eq.s32.totalorder %s24, 1
      %p119 = por %p117, %p118
      %p120 = scmp.ne.s32.totalorder %s109, %s110
      %p121 = scmp.eq.s32.totalorder %s24, 0
      %p122 = por %p120, %p121
      %p123 = scmp.ne.s32.totalorder %s109, %s110
      %p124 = scmp.eq.s32.totalorder %s25, 1
      %p125 = por %p123, %p124
      %p127 = scmp.ne.s32.totalorder %s110, %s126
      %p128 = scmp.eq.s32.totalorder %s25, 0
      %p129 = por %p127, %p128
      %s131 = sadd.s32 %s130, 1
      %p134 = scmp.eq.s32.totalorder %s19, 1
      %p135 = scmp.ne.s32.totalorder %s130, %s132
      %p136 = scmp.eq.s32.totalorder %s19, 0
      %p137 = por %p135, %p136
      %p138 = scmp.ne.s32.totalorder %s130, %s132
      %p139 = scmp.eq.s32.totalorder %s24, 1
      %p140 = por %p138, %p139
      %p141 = scmp.ne.s32.totalorder %s132, %s133
      %p142 = scmp.eq.s32.totalorder %s24, 0
      %p143 = por %p141, %p142
      %p144 = scmp.ne.s32.totalorder %s132, %s133
      %p145 = scmp.eq.s32.totalorder %s25, 1
      %p146 = por %p144, %p145
      %p148 = scmp.ne.s32.totalorder %s133, %s147
      %p149 = scmp.eq.s32.totalorder %s25, 0
      %p150 = por %p148, %p149
      %s152 = sadd.s32 %s151, 1
      %p155 = scmp.eq.s32.totalorder %s19, 1
      %p156 = scmp.ne.s32.totalorder %s151, %s153
      %p157 = scmp.eq.s32.totalorder %s19, 0
      %p158 = por %p156, %p157
      %p159 = scmp.ne.s32.totalorder %s151, %s153
      %p160 = scmp.eq.s32.totalorder %s24, 1
      %p161 = por %p159, %p160
      %p162 = scmp.ne.s32.totalorder %s153, %s154
      %p163 = scmp.eq.s32.totalorder %s24, 0
      %p164 = por %p162, %p163
      %p165 = scmp.ne.s32.totalorder %s153, %s154
      %p166 = scmp.eq.s32.totalorder %s25, 1
      %p167 = por %p165, %p166
      %p169 = scmp.ne.s32.totalorder %s154, %s168
      %p170 = scmp.eq.s32.totalorder %s25, 0
      %p171 = por %p169, %p170
      %s172 = ssub.s32 %s26, %s45
      %s173 = ssub.s32 %s27, %s41
      %s174 = sor.u32 %s172, %s173
      %p175 = scmp.eq.s32.totalorder %s174, 0
      %s177 = sadd.s32 %s176, 1
      %s178 = scalar_select %p175, %s176, %s177
      %p181 = pneg %p175
      %p182 = scmp.eq.s32.totalorder %s19, 1
      %p183 = por %p181, %p182
      %p184 = scmp.ne.s32.totalorder %s176, %s179
      %p185 = scmp.eq.s32.totalorder %s19, 0
      %p186 = por %p184, %p185
      %p187 = scmp.ne.s32.totalorder %s176, %s179
      %p188 = scmp.eq.s32.totalorder %s24, 1
      %p189 = por %p187, %p188
      %p190 = scmp.ne.s32.totalorder %s179, %s180
      %p191 = scmp.eq.s32.totalorder %s24, 0
      %p192 = por %p190, %p191
      %p193 = scmp.ne.s32.totalorder %s179, %s180
      %p194 = scmp.eq.s32.totalorder %s25, 1
      %p195 = por %p193, %p194
      %p197 = scmp.ne.s32.totalorder %s180, %s196
      %p198 = scmp.eq.s32.totalorder %s25, 0
      %p199 = por %p197, %p198
      %p200 = scmp.le.s32.totalorder 1, %s19
      %p201 = scmp.lt.s32.totalorder %s19, 3
      %p202 = pnand %p200, %p201
      %p203 = pneg %p202
      // Predicated region
      $region9: #{tpu_custom_call.1} parent=5 // pred_check
        _
      $region10: #{tpu_custom_call.1} parent=5 // pred_check_branch
        %205 = sbr.rel (%p202) target = $region12
      $region11: #{tpu_custom_call.1} parent=5 // pred_region
        %s206 = ssub.s32 %s19, 1
        // Predicated region
        $region13: #{tpu_custom_call.1} parent=11 // pred_check
          %p207 = pneg %p66
        $region14: #{tpu_custom_call.1} parent=11 // pred_check_branch
          %209 = sbr.rel (%p207) target = $region16
        $region15: #{tpu_custom_call.1} parent=11 // pred_region
          %s211 = ssub.s32 512, 512
          %212 = vsyncadd [#allocation6], %s211
          %s213 = smul.addr %s29, 4
          %s214 = sadd.s32 %s30, %s213
          %s215 = smul.addr %s214, 128
          %s216 = scalar_lea.hbm %s0, %s215
          %s217 = sshll.u32 [#allocation5], 4
          %s218 = int_to_ptr.vmem [resolvable:$true] %s217
          %223 = dma.hbm_to_vmem [thread:$0]  %s216, 512, %s218, [#allocation6], 128, 128, 8
        $region16: #{tpu_custom_call.1} parent=11 // pred_fallthru
          _
        // Predicated region
        $region17: #{tpu_custom_call.1} parent=11 // pred_check
          %p224 = pneg %p143
        $region18: #{tpu_custom_call.1} parent=11 // pred_check_branch
          %226 = sbr.rel (%p224) target = $region20
        $region19: #{tpu_custom_call.1} parent=11 // pred_region
          %s228 = ssub.s32 512, 512
          %229 = vsyncadd [#allocation12], %s228
          %s230 = sshll.u32 [#allocation11], 4
          %s231 = int_to_ptr.vmem [resolvable:$true] %s230
          %236 = dma.hbm_to_vmem [thread:$0]  %s3, 512, %s231, [#allocation12], 128, 128, 8
        $region20: #{tpu_custom_call.1} parent=11 // pred_fallthru
          _
        // Predicated region
        $region21: #{tpu_custom_call.1} parent=11 // pred_check
          %p237 = pneg %p164
        $region22: #{tpu_custom_call.1} parent=11 // pred_check_branch
          %239 = sbr.rel (%p237) target = $region24
        $region23: #{tpu_custom_call.1} parent=11 // pred_region
          _
        $region24: #{tpu_custom_call.1} parent=11 // pred_fallthru
          _
      $region12: #{tpu_custom_call.1} parent=5 // pred_fallthru
        _
      %p240 = scmp.lt.s32.totalorder %s19, 2
      // Predicated region
      $region25: #{tpu_custom_call.1} parent=5 // pred_check
        %p241 = pneg %p240
      $region26: #{tpu_custom_call.1} parent=5 // pred_check_branch
        %243 = sbr.rel (%p241) target = $region28
      $region27: #{tpu_custom_call.1} parent=5 // pred_region
        // Predicated region
        $region29: #{tpu_custom_call.1} parent=27 // pred_check
          %p244 = pneg %p88
        $region30: #{tpu_custom_call.1} parent=27 // pred_check_branch
          %246 = sbr.rel (%p244) target = $region32
        $region31: #{tpu_custom_call.1} parent=27 // pred_region
          %s247 = sand.u32 %s19, 1
          %s248 = scalar_lea.sflag [#allocation9], %s247
          %s249 = sand.u32 %s78, 1
          %s250 = smul.addr %s249, 32
          %s251 = scalar_lea.vmem [#allocation8], %s250
          %s253 = ssub.s32 512, 512
          %254 = vsyncadd %s248, %s253
          %s255 = smul.addr %s26, 4
          %s256 = sadd.s32 %s28, %s255
          %s257 = smul.addr %s256, 128
          %s258 = scalar_lea.hbm %s1, %s257
          %s259 = sshll.u32 %s251, 4
          %s260 = int_to_ptr.vmem [resolvable:$true] %s259
          %265 = dma.hbm_to_vmem [thread:$0]  %s258, 512, %s260, %s248, 128, 128, 8
        $region32: #{tpu_custom_call.1} parent=27 // pred_fallthru
          _
        // Predicated region
        $region33: #{tpu_custom_call.1} parent=27 // pred_check
          %p266 = pneg %p116
        $region34: #{tpu_custom_call.1} parent=27 // pred_check_branch
          %268 = sbr.rel (%p266) target = $region36
        $region35: #{tpu_custom_call.1} parent=27 // pred_region
          %s269 = sand.u32 %s19, 1
          %s270 = scalar_lea.sflag [#allocation9], %s269
          %s271 = sand.u32 %s106, 1
          %s272 = smul.addr %s271, 32
          %s273 = scalar_lea.vmem [#allocation10], %s272
          %s275 = ssub.s32 512, 512
          %276 = vsyncadd %s270, %s275
          %s277 = smul.addr %s26, 4
          %s278 = sadd.s32 %s28, %s277
          %s279 = smul.addr %s278, 128
          %s280 = scalar_lea.hbm %s2, %s279
          %s281 = sshll.u32 %s273, 4
          %s282 = int_to_ptr.vmem [resolvable:$true] %s281
          %287 = dma.hbm_to_vmem [thread:$0]  %s280, 512, %s282, %s270, 128, 128, 8
        $region36: #{tpu_custom_call.1} parent=27 // pred_fallthru
          _
      $region28: #{tpu_custom_call.1} parent=5 // pred_fallthru
        _
      %p288 = scmp.le.s32.totalorder 1, %s19
      %p289 = scmp.lt.s32.totalorder %s19, 3
      %p290 = pnand %p288, %p289
      %p291 = pneg %p290
      // Predicated region
      $region37: #{tpu_custom_call.1} parent=5 // pred_check
        _
      $region38: #{tpu_custom_call.1} parent=5 // pred_check_branch
        %293 = sbr.rel (%p290) target = $region40
      $region39: #{tpu_custom_call.1} parent=5 // pred_region
        %s294 = ssub.s32 %s19, 1
        // Predicated region
        $region41: #{tpu_custom_call.1} parent=39 // pred_check
          %p295 = pneg %p66
        $region42: #{tpu_custom_call.1} parent=39 // pred_check_branch
          %297 = sbr.rel (%p295) target = $region44
        $region43: #{tpu_custom_call.1} parent=39 // pred_region
          %298 = dma.done [#allocation6], 512
        $region44: #{tpu_custom_call.1} parent=39 // pred_fallthru
          _
        %s299 = sand.u32 %s24, 1
        %s300 = scalar_lea.sflag [#allocation9], %s299
        %s301 = sand.u32 %s81, 1
        %s302 = smul.addr %s301, 32
        %s303 = scalar_lea.vmem [#allocation8], %s302
        // Predicated region
        $region45: #{tpu_custom_call.1} parent=39 // pred_check
          %p304 = pneg %p94
        $region46: #{tpu_custom_call.1} parent=39 // pred_check_branch
          %306 = sbr.rel (%p304) target = $region48
        $region47: #{tpu_custom_call.1} parent=39 // pred_region
          %307 = dma.done %s300, 512
        $region48: #{tpu_custom_call.1} parent=39 // pred_fallthru
          _
        %s308 = sand.u32 %s24, 1
        %s309 = scalar_lea.sflag [#allocation9], %s308
        %s310 = sand.u32 %s109, 1
        %s311 = smul.addr %s310, 32
        %s312 = scalar_lea.vmem [#allocation10], %s311
        // Predicated region
        $region49: #{tpu_custom_call.1} parent=39 // pred_check
          %p313 = pneg %p122
        $region50: #{tpu_custom_call.1} parent=39 // pred_check_branch
          %315 = sbr.rel (%p313) target = $region52
        $region51: #{tpu_custom_call.1} parent=39 // pred_region
          %316 = dma.done %s309, 512
        $region52: #{tpu_custom_call.1} parent=39 // pred_fallthru
          _
        // Predicated region
        $region53: #{tpu_custom_call.1} parent=39 // pred_check
          %p317 = pneg %p143
        $region54: #{tpu_custom_call.1} parent=39 // pred_check_branch
          %319 = sbr.rel (%p317) target = $region56
        $region55: #{tpu_custom_call.1} parent=39 // pred_region
          %320 = dma.done [#allocation12], 512
        $region56: #{tpu_custom_call.1} parent=39 // pred_fallthru
          _
        %p321 = pneg %p66
        %p322 = pneg %p63
        %s323 = sand.u32 %s24, 1
        %s324 = scalar_lea.sflag [#allocation9], %s323
        %s325 = sand.u32 %s81, 1
        %s326 = smul.addr %s325, 32
        %s327 = scalar_lea.vmem [#allocation8], %s326
        %p328 = pneg %p94
        %p329 = pneg %p91
        %s330 = sand.u32 %s24, 1
        %s331 = scalar_lea.sflag [#allocation9], %s330
        %s332 = sand.u32 %s109, 1
        %s333 = smul.addr %s332, 32
        %s334 = scalar_lea.vmem [#allocation10], %s333
        %p335 = pneg %p122
        %p336 = pneg %p119
        %p337 = pneg %p143
        %p338 = pneg %p140
        %p339 = pneg %p164
        %p340 = pneg %p161
        %p341 = pneg %p192
        %p342 = pneg %p189
        %s343 = sand.u32 %s179, 1
        %s344 = scalar_lea.sflag [#allocation7], %s343
        %s345 = sand.u32 %s179, 1
        %s346 = smul.addr %s345, 8
        %s347 = scalar_lea.vmem [#allocation13], %s346
        %p348 = scmp.eq.s32.totalorder %s31, 0
        // Predicated region
        $region57: #{tpu_custom_call.1} parent=39 // pred_check
          %p349 = pneg %p348
        $region58: #{tpu_custom_call.1} parent=39 // pred_check_branch
          %351 = sbr.rel (%p349) target = $region60
        $region59: #{tpu_custom_call.1} parent=39 // pred_region
          %vm352 = vcmask 7168
          %353 = vst.msk [vmem:[#allocation2] sm:$0xff] %vm352, -inf
          %354 = vst.msk [vmem:[#allocation2 + $0x8] sm:$0xff] %vm352, -inf
          %355 = vst.msk [vmem:[#allocation2 + $0x10] sm:$0xff] %vm352, -inf
          %356 = vst.msk [vmem:[#allocation2 + $0x18] sm:$0xff] %vm352, -inf
          %357 = vst.msk [vmem:[#allocation3] sm:$0xff] %vm352, 0.0
          %358 = vst.msk [vmem:[#allocation3 + $0x8] sm:$0xff] %vm352, 0.0
          %359 = vst.msk [vmem:[#allocation3 + $0x10] sm:$0xff] %vm352, 0.0
          %360 = vst.msk [vmem:[#allocation3 + $0x18] sm:$0xff] %vm352, 0.0
          %vm361 = vcmask 64512
          %362 = vst.msk [vmem:[#allocation4] sm:$0xff] %vm361, 0.0
          %363 = vst.msk [vmem:[#allocation4 + $0x8] sm:$0xff] %vm361, 0.0
          %364 = vst.msk [vmem:[#allocation4 + $0x10] sm:$0xff] %vm361, 0.0
          %365 = vst.msk [vmem:[#allocation4 + $0x18] sm:$0xff] %vm361, 0.0
        $region60: #{tpu_custom_call.1} parent=39 // pred_fallthru
          _
        %v366 = vld [vmem:[#allocation5] sm:$0xff]
        %v367 = vld [vmem:[#allocation5 + $0x8] sm:$0xff]
        %v368 = vld [vmem:[#allocation5 + $0x10] sm:$0xff]
        %v369 = vld [vmem:[#allocation5 + $0x18] sm:$0xff]
        %v370 = vld [vmem:[%s303] sm:$0xff]
        %v371 = vld [vmem:[%s303 + $0x8] sm:$0xff]
        %v372 = vld [vmem:[%s303 + $0x10] sm:$0xff]
        %v373 = vld [vmem:[%s303 + $0x18] sm:$0xff]
        %v374 = vld [vmem:[%s312] sm:$0xff]
        %v375 = vld [vmem:[%s312 + $0x8] sm:$0xff]
        %v376 = vld [vmem:[%s312 + $0x10] sm:$0xff]
        %v377 = vld [vmem:[%s312 + $0x18] sm:$0xff]
        %vm378 = vcmask 64512
        %v380 = vsel %vm378, %v366, 0
        %v383 = vsel %vm378, %v370, 0
        %385 = vmatprep.subr.mxu0 0.0
        %386 = vmatpush1.xpose.msra.mxu0 0.0
        %387 = vmatprep.subr.mxu0 0.0
        %388 = vmatpush1.xpose.msra.mxu0 0.0
        %389 = vmatprep.subr.mxu0 0.0
        %390 = vmatpush1.xpose.msra.mxu0 0.0
        %391 = vmatprep.subr.mxu0 0.0
        %392 = vmatpush1.xpose.msra.mxu0 0.0
        %393 = vmatprep.subr.mxu0 0.0
        %394 = vmatpush1.xpose.msra.mxu0 0.0
        %395 = vmatprep.subr.mxu0 0.0
        %396 = vmatpush1.xpose.msra.mxu0 0.0
        %397 = vmatprep.subr.mxu0 0.0
        %398 = vmatpush1.xpose.msra.mxu0 0.0
        %399 = vmatprep.subr.mxu0 0.0
        %400 = vmatpush1.xpose.msra.mxu0 0.0
        %401 = vmatprep.subr.mxu0 0.0
        %402 = vmatpush1.xpose.msra.mxu0 0.0
        %403 = vmatprep.subr.mxu0 0.0
        %404 = vmatpush1.xpose.msra.mxu0 0.0
        %405 = vmatprep.subr.mxu0 0.0
        %406 = vmatpush1.xpose.msra.mxu0 0.0
        %407 = vmatprep.subr.mxu0 0.0
        %408 = vmatpush1.xpose.msra.mxu0 0.0
        %409 = vmatprep.subr.mxu0 0.0
        %410 = vmatpush1.xpose.msra.mxu0 0.0
        %411 = vmatprep.subr.mxu0 0.0
        %412 = vmatpush1.xpose.msra.mxu0 0.0
        %413 = vmatprep.subr.mxu0 0.0
        %414 = vmatpush1.xpose.msra.mxu0 0.0
        %415 = vmatprep.subr.mxu0 0.0
        %416 = vmatpush1.xpose.msra.mxu0 %v383
        %417 = vmatprep.subr.mxu0 0.0
        %418 = vmatpush2.xpose.msra.mxu0 0.0
        %419 = vmatprep.subr.mxu0 0.0
        %420 = vmatpush2.xpose.msra.mxu0 0.0
        %421 = vmatprep.subr.mxu0 0.0
        %422 = vmatpush2.xpose.msra.mxu0 0.0
        %423 = vmatprep.subr.mxu0 0.0
        %424 = vmatpush2.xpose.msra.mxu0 0.0
        %425 = vmatprep.subr.mxu0 0.0
        %426 = vmatpush2.xpose.msra.mxu0 0.0
        %427 = vmatprep.subr.mxu0 0.0
        %428 = vmatpush2.xpose.msra.mxu0 0.0
        %429 = vmatprep.subr.mxu0 0.0
        %430 = vmatpush2.xpose.msra.mxu0 0.0
        %431 = vmatprep.subr.mxu0 0.0
        %432 = vmatpush2.xpose.msra.mxu0 0.0
        %433 = vmatprep.subr.mxu0 0.0
        %434 = vmatpush2.xpose.msra.mxu0 0.0
        %435 = vmatprep.subr.mxu0 0.0
        %436 = vmatpush2.xpose.msra.mxu0 0.0
        %437 = vmatprep.subr.mxu0 0.0
        %438 = vmatpush2.xpose.msra.mxu0 0.0
        %439 = vmatprep.subr.mxu0 0.0
        %440 = vmatpush2.xpose.msra.mxu0 0.0
        %441 = vmatprep.subr.mxu0 0.0
        %442 = vmatpush2.xpose.msra.mxu0 0.0
        %443 = vmatprep.subr.mxu0 0.0
        %444 = vmatpush2.xpose.msra.mxu0 0.0
        %445 = vmatprep.subr.mxu0 0.0
        %446 = vmatpush2.xpose.msra.mxu0 0.0
        %447 = vmatprep.subr.mxu0 0.0
        %448 = vmatpush2.xpose.msra.mxu0 0.0
        %449 = vmatprep.mubr.f32.mxu0 0.0
        %450 = vmatmul.mubr.f32.gmra.mxu0 %v380
        %v451 = vpop.f32.mrf.mxu0
        %v452 = vadd.f32 0.0, %v451
        %v453 = vpop.f32.mrf.mxu0
        %454 = vdwg.mxu0
        %v456 = vsel %vm378, %v367, 0
        %v459 = vsel %vm378, %v371, 0
        %461 = vmatprep.subr.mxu0 0.0
        %462 = vmatpush1.xpose.msra.mxu0 0.0
        %463 = vmatprep.subr.mxu0 0.0
        %464 = vmatpush1.xpose.msra.mxu0 0.0
        %465 = vmatprep.subr.mxu0 0.0
        %466 = vmatpush1.xpose.msra.mxu0 0.0
        %467 = vmatprep.subr.mxu0 0.0
        %468 = vmatpush1.xpose.msra.mxu0 0.0
        %469 = vmatprep.subr.mxu0 0.0
        %470 = vmatpush1.xpose.msra.mxu0 0.0
        %471 = vmatprep.subr.mxu0 0.0
        %472 = vmatpush1.xpose.msra.mxu0 0.0
        %473 = vmatprep.subr.mxu0 0.0
        %474 = vmatpush1.xpose.msra.mxu0 0.0
        %475 = vmatprep.subr.mxu0 0.0
        %476 = vmatpush1.xpose.msra.mxu0 0.0
        %477 = vmatprep.subr.mxu0 0.0
        %478 = vmatpush1.xpose.msra.mxu0 0.0
        %479 = vmatprep.subr.mxu0 0.0
        %480 = vmatpush1.xpose.msra.mxu0 0.0
        %481 = vmatprep.subr.mxu0 0.0
        %482 = vmatpush1.xpose.msra.mxu0 0.0
        %483 = vmatprep.subr.mxu0 0.0
        %484 = vmatpush1.xpose.msra.mxu0 0.0
        %485 = vmatprep.subr.mxu0 0.0
        %486 = vmatpush1.xpose.msra.mxu0 0.0
        %487 = vmatprep.subr.mxu0 0.0
        %488 = vmatpush1.xpose.msra.mxu0 0.0
        %489 = vmatprep.subr.mxu0 0.0
        %490 = vmatpush1.xpose.msra.mxu0 0.0
        %491 = vmatprep.subr.mxu0 0.0
        %492 = vmatpush1.xpose.msra.mxu0 %v459
        %493 = vmatprep.subr.mxu0 0.0
        %494 = vmatpush2.xpose.msra.mxu0 0.0
        %495 = vmatprep.subr.mxu0 0.0
        %496 = vmatpush2.xpose.msra.mxu0 0.0
        %497 = vmatprep.subr.mxu0 0.0
        %498 = vmatpush2.xpose.msra.mxu0 0.0
        %499 = vmatprep.subr.mxu0 0.0
        %500 = vmatpush2.xpose.msra.mxu0 0.0
        %501 = vmatprep.subr.mxu0 0.0
        %502 = vmatpush2.xpose.msra.mxu0 0.0
        %503 = vmatprep.subr.mxu0 0.0
        %504 = vmatpush2.xpose.msra.mxu0 0.0
        %505 = vmatprep.subr.mxu0 0.0
        %506 = vmatpush2.xpose.msra.mxu0 0.0
        %507 = vmatprep.subr.mxu0 0.0
        %508 = vmatpush2.xpose.msra.mxu0 0.0
        %509 = vmatprep.subr.mxu0 0.0
        %510 = vmatpush2.xpose.msra.mxu0 0.0
        %511 = vmatprep.subr.mxu0 0.0
        %512 = vmatpush2.xpose.msra.mxu0 0.0
        %513 = vmatprep.subr.mxu0 0.0
        %514 = vmatpush2.xpose.msra.mxu0 0.0
        %515 = vmatprep.subr.mxu0 0.0
        %516 = vmatpush2.xpose.msra.mxu0 0.0
        %517 = vmatprep.subr.mxu0 0.0
        %518 = vmatpush2.xpose.msra.mxu0 0.0
        %519 = vmatprep.subr.mxu0 0.0
        %520 = vmatpush2.xpose.msra.mxu0 0.0
        %521 = vmatprep.subr.mxu0 0.0
        %522 = vmatpush2.xpose.msra.mxu0 0.0
        %523 = vmatprep.subr.mxu0 0.0
        %524 = vmatpush2.xpose.msra.mxu0 0.0
        %525 = vmatprep.mubr.f32.mxu0 0.0
        %526 = vmatmul.mubr.f32.gmra.mxu0 %v456
        %v527 = vpop.f32.mrf.mxu0
        %v528 = vadd.f32 0.0, %v527
        %v529 = vpop.f32.mrf.mxu0
        %530 = vdwg.mxu0
        %v532 = vsel %vm378, %v368, 0
        %v535 = vsel %vm378, %v372, 0
        %537 = vmatprep.subr.mxu0 0.0
        %538 = vmatpush1.xpose.msra.mxu0 0.0
        %539 = vmatprep.subr.mxu0 0.0
        %540 = vmatpush1.xpose.msra.mxu0 0.0
        %541 = vmatprep.subr.mxu0 0.0
        %542 = vmatpush1.xpose.msra.mxu0 0.0
        %543 = vmatprep.subr.mxu0 0.0
        %544 = vmatpush1.xpose.msra.mxu0 0.0
        %545 = vmatprep.subr.mxu0 0.0
        %546 = vmatpush1.xpose.msra.mxu0 0.0
        %547 = vmatprep.subr.mxu0 0.0
        %548 = vmatpush1.xpose.msra.mxu0 0.0
        %549 = vmatprep.subr.mxu0 0.0
        %550 = vmatpush1.xpose.msra.mxu0 0.0
        %551 = vmatprep.subr.mxu0 0.0
        %552 = vmatpush1.xpose.msra.mxu0 0.0
        %553 = vmatprep.subr.mxu0 0.0
        %554 = vmatpush1.xpose.msra.mxu0 0.0
        %555 = vmatprep.subr.mxu0 0.0
        %556 = vmatpush1.xpose.msra.mxu0 0.0
        %557 = vmatprep.subr.mxu0 0.0
        %558 = vmatpush1.xpose.msra.mxu0 0.0
        %559 = vmatprep.subr.mxu0 0.0
        %560 = vmatpush1.xpose.msra.mxu0 0.0
        %561 = vmatprep.subr.mxu0 0.0
        %562 = vmatpush1.xpose.msra.mxu0 0.0
        %563 = vmatprep.subr.mxu0 0.0
        %564 = vmatpush1.xpose.msra.mxu0 0.0
        %565 = vmatprep.subr.mxu0 0.0
        %566 = vmatpush1.xpose.msra.mxu0 0.0
        %567 = vmatprep.subr.mxu0 0.0
        %568 = vmatpush1.xpose.msra.mxu0 %v535
        %569 = vmatprep.subr.mxu0 0.0
        %570 = vmatpush2.xpose.msra.mxu0 0.0
        %571 = vmatprep.subr.mxu0 0.0
        %572 = vmatpush2.xpose.msra.mxu0 0.0
        %573 = vmatprep.subr.mxu0 0.0
        %574 = vmatpush2.xpose.msra.mxu0 0.0
        %575 = vmatprep.subr.mxu0 0.0
        %576 = vmatpush2.xpose.msra.mxu0 0.0
        %577 = vmatprep.subr.mxu0 0.0
        %578 = vmatpush2.xpose.msra.mxu0 0.0
        %579 = vmatprep.subr.mxu0 0.0
        %580 = vmatpush2.xpose.msra.mxu0 0.0
        %581 = vmatprep.subr.mxu0 0.0
        %582 = vmatpush2.xpose.msra.mxu0 0.0
        %583 = vmatprep.subr.mxu0 0.0
        %584 = vmatpush2.xpose.msra.mxu0 0.0
        %585 = vmatprep.subr.mxu0 0.0
        %586 = vmatpush2.xpose.msra.mxu0 0.0
        %587 = vmatprep.subr.mxu0 0.0
        %588 = vmatpush2.xpose.msra.mxu0 0.0
        %589 = vmatprep.subr.mxu0 0.0
        %590 = vmatpush2.xpose.msra.mxu0 0.0
        %591 = vmatprep.subr.mxu0 0.0
        %592 = vmatpush2.xpose.msra.mxu0 0.0
        %593 = vmatprep.subr.mxu0 0.0
        %594 = vmatpush2.xpose.msra.mxu0 0.0
        %595 = vmatprep.subr.mxu0 0.0
        %596 = vmatpush2.xpose.msra.mxu0 0.0
        %597 = vmatprep.subr.mxu0 0.0
        %598 = vmatpush2.xpose.msra.mxu0 0.0
        %599 = vmatprep.subr.mxu0 0.0
        %600 = vmatpush2.xpose.msra.mxu0 0.0
        %601 = vmatprep.mubr.f32.mxu0 0.0
        %602 = vmatmul.mubr.f32.gmra.mxu0 %v532
        %v603 = vpop.f32.mrf.mxu0
        %v604 = vadd.f32 0.0, %v603
        %v605 = vpop.f32.mrf.mxu0
        %606 = vdwg.mxu0
        %v608 = vsel %vm378, %v369, 0
        %v611 = vsel %vm378, %v373, 0
        %613 = vmatprep.subr.mxu0 0.0
        %614 = vmatpush1.xpose.msra.mxu0 0.0
        %615 = vmatprep.subr.mxu0 0.0
        %616 = vmatpush1.xpose.msra.mxu0 0.0
        %617 = vmatprep.subr.mxu0 0.0
        %618 = vmatpush1.xpose.msra.mxu0 0.0
        %619 = vmatprep.subr.mxu0 0.0
        %620 = vmatpush1.xpose.msra.mxu0 0.0
        %621 = vmatprep.subr.mxu0 0.0
        %622 = vmatpush1.xpose.msra.mxu0 0.0
        %623 = vmatprep.subr.mxu0 0.0
        %624 = vmatpush1.xpose.msra.mxu0 0.0
        %625 = vmatprep.subr.mxu0 0.0
        %626 = vmatpush1.xpose.msra.mxu0 0.0
        %627 = vmatprep.subr.mxu0 0.0
        %628 = vmatpush1.xpose.msra.mxu0 0.0
        %629 = vmatprep.subr.mxu0 0.0
        %630 = vmatpush1.xpose.msra.mxu0 0.0
        %631 = vmatprep.subr.mxu0 0.0
        %632 = vmatpush1.xpose.msra.mxu0 0.0
        %633 = vmatprep.subr.mxu0 0.0
        %634 = vmatpush1.xpose.msra.mxu0 0.0
        %635 = vmatprep.subr.mxu0 0.0
        %636 = vmatpush1.xpose.msra.mxu0 0.0
        %637 = vmatprep.subr.mxu0 0.0
        %638 = vmatpush1.xpose.msra.mxu0 0.0
        %639 = vmatprep.subr.mxu0 0.0
        %640 = vmatpush1.xpose.msra.mxu0 0.0
        %641 = vmatprep.subr.mxu0 0.0
        %642 = vmatpush1.xpose.msra.mxu0 0.0
        %643 = vmatprep.subr.mxu0 0.0
        %644 = vmatpush1.xpose.msra.mxu0 %v611
        %645 = vmatprep.subr.mxu0 0.0
        %646 = vmatpush2.xpose.msra.mxu0 0.0
        %647 = vmatprep.subr.mxu0 0.0
        %648 = vmatpush2.xpose.msra.mxu0 0.0
        %649 = vmatprep.subr.mxu0 0.0
        %650 = vmatpush2.xpose.msra.mxu0 0.0
        %651 = vmatprep.subr.mxu0 0.0
        %652 = vmatpush2.xpose.msra.mxu0 0.0
        %653 = vmatprep.subr.mxu0 0.0
        %654 = vmatpush2.xpose.msra.mxu0 0.0
        %655 = vmatprep.subr.mxu0 0.0
        %656 = vmatpush2.xpose.msra.mxu0 0.0
        %657 = vmatprep.subr.mxu0 0.0
        %658 = vmatpush2.xpose.msra.mxu0 0.0
        %659 = vmatprep.subr.mxu0 0.0
        %660 = vmatpush2.xpose.msra.mxu0 0.0
        %661 = vmatprep.subr.mxu0 0.0
        %662 = vmatpush2.xpose.msra.mxu0 0.0
        %663 = vmatprep.subr.mxu0 0.0
        %664 = vmatpush2.xpose.msra.mxu0 0.0
        %665 = vmatprep.subr.mxu0 0.0
        %666 = vmatpush2.xpose.msra.mxu0 0.0
        %667 = vmatprep.subr.mxu0 0.0
        %668 = vmatpush2.xpose.msra.mxu0 0.0
        %669 = vmatprep.subr.mxu0 0.0
        %670 = vmatpush2.xpose.msra.mxu0 0.0
        %671 = vmatprep.subr.mxu0 0.0
        %672 = vmatpush2.xpose.msra.mxu0 0.0
        %673 = vmatprep.subr.mxu0 0.0
        %674 = vmatpush2.xpose.msra.mxu0 0.0
        %675 = vmatprep.subr.mxu0 0.0
        %676 = vmatpush2.xpose.msra.mxu0 0.0
        %677 = vmatprep.mubr.f32.mxu0 0.0
        %678 = vmatmul.mubr.f32.gmra.mxu0 %v608
        %v679 = vpop.f32.mrf.mxu0
        %v680 = vadd.f32 0.0, %v679
        %v681 = vpop.f32.mrf.mxu0
        %682 = vdwg.mxu0
        %v683 = vld [vmem:[#allocation2] sm:$0xff]
        %v684 = vld [vmem:[#allocation2 + $0x8] sm:$0xff]
        %v685 = vld [vmem:[#allocation2 + $0x10] sm:$0xff]
        %v686 = vld [vmem:[#allocation2 + $0x18] sm:$0xff]
        %v687 = vsel %vm378, %v452, -inf
        %688 = vmax.xlane.f32.xlu0 %v687
        %v689 = vpop.xlane.xlu0 %688
        %v690 = vsel %vm378, %v528, -inf
        %691 = vmax.xlane.f32.xlu0 %v690
        %v692 = vpop.xlane.xlu0 %691
        %v693 = vsel %vm378, %v604, -inf
        %694 = vmax.xlane.f32.xlu0 %v693
        %v695 = vpop.xlane.xlu0 %694
        %v696 = vsel %vm378, %v680, -inf
        %697 = vmax.xlane.f32.xlu0 %v696
        %v698 = vpop.xlane.xlu0 %697
        %v699 = vmax.f32 %v683, %v689
        %v700 = vmax.f32 %v684, %v692
        %v701 = vmax.f32 %v685, %v695
        %v702 = vmax.f32 %v686, %v698
        %v703 = vsub.f32 %v683, %v699
        %v704 = vsub.f32 %v684, %v700
        %v705 = vsub.f32 %v685, %v701
        %v706 = vsub.f32 %v686, %v702
        %v707 = vmul.f32 %v703, 1.442695
        %v708 = vpow.pop %v707
        %v709 = vmul.f32 %v704, 1.442695
        %v710 = vpow.pop %v709
        %v711 = vmul.f32 %v705, 1.442695
        %v712 = vpow.pop %v711
        %v713 = vmul.f32 %v706, 1.442695
        %v714 = vpow.pop %v713
        %716 = vset.pattern.permute.xlu0 0
        %717 = vperm.xlu0 %716, %v699
        %v718 = vpop.permute.xlu0 %717
        %721 = vset.pattern.permute.xlu0 0
        %722 = vperm.xlu0 %721, %v700
        %v723 = vpop.permute.xlu0 %722
        %726 = vset.pattern.permute.xlu0 0
        %727 = vperm.xlu0 %726, %v701
        %v728 = vpop.permute.xlu0 %727
        %731 = vset.pattern.permute.xlu0 0
        %732 = vperm.xlu0 %731, %v702
        %v733 = vpop.permute.xlu0 %732
        %v735 = vsub.f32 %v452, %v718
        %v736 = vsub.f32 %v528, %v723
        %v737 = vsub.f32 %v604, %v728
        %v738 = vsub.f32 %v680, %v733
        %v739 = vmul.f32 %v735, 1.442695
        %v740 = vpow.pop %v739
        %v741 = vmul.f32 %v736, 1.442695
        %v742 = vpow.pop %v741
        %v743 = vmul.f32 %v737, 1.442695
        %v744 = vpow.pop %v743
        %v745 = vmul.f32 %v738, 1.442695
        %v746 = vpow.pop %v745
        %v747 = vld [vmem:[#allocation3] sm:$0xff]
        %v748 = vld [vmem:[#allocation3 + $0x8] sm:$0xff]
        %v749 = vld [vmem:[#allocation3 + $0x10] sm:$0xff]
        %v750 = vld [vmem:[#allocation3 + $0x18] sm:$0xff]
        %v751 = vmul.f32 %v708, %v747
        %v752 = vmul.f32 %v710, %v748
        %v753 = vmul.f32 %v712, %v749
        %v754 = vmul.f32 %v714, %v750
        %v755 = vsel %vm378, %v740, 0.0
        %756 = vadd.xlane.f32.xlu0 %v755
        %v757 = vpop.xlane.xlu0 %756
        %v758 = vsel %vm378, %v742, 0.0
        %759 = vadd.xlane.f32.xlu0 %v758
        %v760 = vpop.xlane.xlu0 %759
        %v761 = vsel %vm378, %v744, 0.0
        %762 = vadd.xlane.f32.xlu0 %v761
        %v763 = vpop.xlane.xlu0 %762
        %v764 = vsel %vm378, %v746, 0.0
        %765 = vadd.xlane.f32.xlu0 %v764
        %v766 = vpop.xlane.xlu0 %765
        %v767 = vadd.f32 %v751, %v757
        %v768 = vadd.f32 %v752, %v760
        %v769 = vadd.f32 %v753, %v763
        %v770 = vadd.f32 %v754, %v766
        %vm771 = vcmask 7168
        %772 = vst.msk [vmem:[#allocation3] sm:$0xff] %vm771, %v767
        %773 = vst.msk [vmem:[#allocation3 + $0x8] sm:$0xff] %vm771, %v768
        %774 = vst.msk [vmem:[#allocation3 + $0x10] sm:$0xff] %vm771, %v769
        %775 = vst.msk [vmem:[#allocation3 + $0x18] sm:$0xff] %vm771, %v770
        %v776 = vld [vmem:[#allocation4] sm:$0xff]
        %v777 = vld [vmem:[#allocation4 + $0x8] sm:$0xff]
        %v778 = vld [vmem:[#allocation4 + $0x10] sm:$0xff]
        %v779 = vld [vmem:[#allocation4 + $0x18] sm:$0xff]
        %781 = vset.pattern.permute.xlu0 0
        %782 = vperm.xlu0 %781, %v708
        %v783 = vpop.permute.xlu0 %782
        %786 = vset.pattern.permute.xlu0 0
        %787 = vperm.xlu0 %786, %v710
        %v788 = vpop.permute.xlu0 %787
        %791 = vset.pattern.permute.xlu0 0
        %792 = vperm.xlu0 %791, %v712
        %v793 = vpop.permute.xlu0 %792
        %796 = vset.pattern.permute.xlu0 0
        %797 = vperm.xlu0 %796, %v714
        %v798 = vpop.permute.xlu0 %797
        %v800 = vmul.f32 %v783, %v776
        %v801 = vmul.f32 %v788, %v777
        %v802 = vmul.f32 %v793, %v778
        %v803 = vmul.f32 %v798, %v779
        %v805 = vsel %vm378, %v740, 0
        %807 = vmatprep.subr.mxu0 0.0
        %808 = vmatpush1.msra.mxu0 0.0
        %809 = vmatprep.subr.mxu0 0.0
        %810 = vmatpush1.msra.mxu0 0.0
        %811 = vmatprep.subr.mxu0 0.0
        %812 = vmatpush1.msra.mxu0 0.0
        %813 = vmatprep.subr.mxu0 0.0
        %814 = vmatpush1.msra.mxu0 0.0
        %815 = vmatprep.subr.mxu0 0.0
        %816 = vmatpush1.msra.mxu0 0.0
        %817 = vmatprep.subr.mxu0 0.0
        %818 = vmatpush1.msra.mxu0 0.0
        %819 = vmatprep.subr.mxu0 0.0
        %820 = vmatpush1.msra.mxu0 0.0
        %821 = vmatprep.subr.mxu0 0.0
        %822 = vmatpush1.msra.mxu0 0.0
        %823 = vmatprep.subr.mxu0 0.0
        %824 = vmatpush1.msra.mxu0 0.0
        %825 = vmatprep.subr.mxu0 0.0
        %826 = vmatpush1.msra.mxu0 0.0
        %827 = vmatprep.subr.mxu0 0.0
        %828 = vmatpush1.msra.mxu0 0.0
        %829 = vmatprep.subr.mxu0 0.0
        %830 = vmatpush1.msra.mxu0 0.0
        %831 = vmatprep.subr.mxu0 0.0
        %832 = vmatpush1.msra.mxu0 0.0
        %833 = vmatprep.subr.mxu0 0.0
        %834 = vmatpush1.msra.mxu0 0.0
        %835 = vmatprep.subr.mxu0 0.0
        %836 = vmatpush1.msra.mxu0 0.0
        %837 = vmatprep.subr.mxu0 0.0
        %838 = vmatpush1.msra.mxu0 %v374
        %839 = vmatprep.subr.mxu0 0.0
        %840 = vmatpush2.msra.mxu0 0.0
        %841 = vmatprep.subr.mxu0 0.0
        %842 = vmatpush2.msra.mxu0 0.0
        %843 = vmatprep.subr.mxu0 0.0
        %844 = vmatpush2.msra.mxu0 0.0
        %845 = vmatprep.subr.mxu0 0.0
        %846 = vmatpush2.msra.mxu0 0.0
        %847 = vmatprep.subr.mxu0 0.0
        %848 = vmatpush2.msra.mxu0 0.0
        %849 = vmatprep.subr.mxu0 0.0
        %850 = vmatpush2.msra.mxu0 0.0
        %851 = vmatprep.subr.mxu0 0.0
        %852 = vmatpush2.msra.mxu0 0.0
        %853 = vmatprep.subr.mxu0 0.0
        %854 = vmatpush2.msra.mxu0 0.0
        %855 = vmatprep.subr.mxu0 0.0
        %856 = vmatpush2.msra.mxu0 0.0
        %857 = vmatprep.subr.mxu0 0.0
        %858 = vmatpush2.msra.mxu0 0.0
        %859 = vmatprep.subr.mxu0 0.0
        %860 = vmatpush2.msra.mxu0 0.0
        %861 = vmatprep.subr.mxu0 0.0
        %862 = vmatpush2.msra.mxu0 0.0
        %863 = vmatprep.subr.mxu0 0.0
        %864 = vmatpush2.msra.mxu0 0.0
        %865 = vmatprep.subr.mxu0 0.0
        %866 = vmatpush2.msra.mxu0 0.0
        %867 = vmatprep.subr.mxu0 0.0
        %868 = vmatpush2.msra.mxu0 0.0
        %869 = vmatprep.subr.mxu0 0.0
        %870 = vmatpush2.msra.mxu0 0.0
        %871 = vmatprep.mubr.f32.mxu0 0.0
        %872 = vmatmul.mubr.f32.gmra.mxu0 %v805
        %v873 = vpop.f32.mrf.mxu0
        %v874 = vadd.f32 0.0, %v873
        %v875 = vpop.f32.mrf.mxu0
        %876 = vdwg.mxu0
        %v878 = vsel %vm378, %v742, 0
        %880 = vmatprep.subr.mxu0 0.0
        %881 = vmatpush1.msra.mxu0 0.0
        %882 = vmatprep.subr.mxu0 0.0
        %883 = vmatpush1.msra.mxu0 0.0
        %884 = vmatprep.subr.mxu0 0.0
        %885 = vmatpush1.msra.mxu0 0.0
        %886 = vmatprep.subr.mxu0 0.0
        %887 = vmatpush1.msra.mxu0 0.0
        %888 = vmatprep.subr.mxu0 0.0
        %889 = vmatpush1.msra.mxu0 0.0
        %890 = vmatprep.subr.mxu0 0.0
        %891 = vmatpush1.msra.mxu0 0.0
        %892 = vmatprep.subr.mxu0 0.0
        %893 = vmatpush1.msra.mxu0 0.0
        %894 = vmatprep.subr.mxu0 0.0
        %895 = vmatpush1.msra.mxu0 0.0
        %896 = vmatprep.subr.mxu0 0.0
        %897 = vmatpush1.msra.mxu0 0.0
        %898 = vmatprep.subr.mxu0 0.0
        %899 = vmatpush1.msra.mxu0 0.0
        %900 = vmatprep.subr.mxu0 0.0
        %901 = vmatpush1.msra.mxu0 0.0
        %902 = vmatprep.subr.mxu0 0.0
        %903 = vmatpush1.msra.mxu0 0.0
        %904 = vmatprep.subr.mxu0 0.0
        %905 = vmatpush1.msra.mxu0 0.0
        %906 = vmatprep.subr.mxu0 0.0
        %907 = vmatpush1.msra.mxu0 0.0
        %908 = vmatprep.subr.mxu0 0.0
        %909 = vmatpush1.msra.mxu0 0.0
        %910 = vmatprep.subr.mxu0 0.0
        %911 = vmatpush1.msra.mxu0 %v375
        %912 = vmatprep.subr.mxu0 0.0
        %913 = vmatpush2.msra.mxu0 0.0
        %914 = vmatprep.subr.mxu0 0.0
        %915 = vmatpush2.msra.mxu0 0.0
        %916 = vmatprep.subr.mxu0 0.0
        %917 = vmatpush2.msra.mxu0 0.0
        %918 = vmatprep.subr.mxu0 0.0
        %919 = vmatpush2.msra.mxu0 0.0
        %920 = vmatprep.subr.mxu0 0.0
        %921 = vmatpush2.msra.mxu0 0.0
        %922 = vmatprep.subr.mxu0 0.0
        %923 = vmatpush2.msra.mxu0 0.0
        %924 = vmatprep.subr.mxu0 0.0
        %925 = vmatpush2.msra.mxu0 0.0
        %926 = vmatprep.subr.mxu0 0.0
        %927 = vmatpush2.msra.mxu0 0.0
        %928 = vmatprep.subr.mxu0 0.0
        %929 = vmatpush2.msra.mxu0 0.0
        %930 = vmatprep.subr.mxu0 0.0
        %931 = vmatpush2.msra.mxu0 0.0
        %932 = vmatprep.subr.mxu0 0.0
        %933 = vmatpush2.msra.mxu0 0.0
        %934 = vmatprep.subr.mxu0 0.0
        %935 = vmatpush2.msra.mxu0 0.0
        %936 = vmatprep.subr.mxu0 0.0
        %937 = vmatpush2.msra.mxu0 0.0
        %938 = vmatprep.subr.mxu0 0.0
        %939 = vmatpush2.msra.mxu0 0.0
        %940 = vmatprep.subr.mxu0 0.0
        %941 = vmatpush2.msra.mxu0 0.0
        %942 = vmatprep.subr.mxu0 0.0
        %943 = vmatpush2.msra.mxu0 0.0
        %944 = vmatprep.mubr.f32.mxu0 0.0
        %945 = vmatmul.mubr.f32.gmra.mxu0 %v878
        %v946 = vpop.f32.mrf.mxu0
        %v947 = vadd.f32 0.0, %v946
        %v948 = vpop.f32.mrf.mxu0
        %949 = vdwg.mxu0
        %v951 = vsel %vm378, %v744, 0
        %953 = vmatprep.subr.mxu0 0.0
        %954 = vmatpush1.msra.mxu0 0.0
        %955 = vmatprep.subr.mxu0 0.0
        %956 = vmatpush1.msra.mxu0 0.0
        %957 = vmatprep.subr.mxu0 0.0
        %958 = vmatpush1.msra.mxu0 0.0
        %959 = vmatprep.subr.mxu0 0.0
        %960 = vmatpush1.msra.mxu0 0.0
        %961 = vmatprep.subr.mxu0 0.0
        %962 = vmatpush1.msra.mxu0 0.0
        %963 = vmatprep.subr.mxu0 0.0
        %964 = vmatpush1.msra.mxu0 0.0
        %965 = vmatprep.subr.mxu0 0.0
        %966 = vmatpush1.msra.mxu0 0.0
        %967 = vmatprep.subr.mxu0 0.0
        %968 = vmatpush1.msra.mxu0 0.0
        %969 = vmatprep.subr.mxu0 0.0
        %970 = vmatpush1.msra.mxu0 0.0
        %971 = vmatprep.subr.mxu0 0.0
        %972 = vmatpush1.msra.mxu0 0.0
        %973 = vmatprep.subr.mxu0 0.0
        %974 = vmatpush1.msra.mxu0 0.0
        %975 = vmatprep.subr.mxu0 0.0
        %976 = vmatpush1.msra.mxu0 0.0
        %977 = vmatprep.subr.mxu0 0.0
        %978 = vmatpush1.msra.mxu0 0.0
        %979 = vmatprep.subr.mxu0 0.0
        %980 = vmatpush1.msra.mxu0 0.0
        %981 = vmatprep.subr.mxu0 0.0
        %982 = vmatpush1.msra.mxu0 0.0
        %983 = vmatprep.subr.mxu0 0.0
        %984 = vmatpush1.msra.mxu0 %v376
        %985 = vmatprep.subr.mxu0 0.0
        %986 = vmatpush2.msra.mxu0 0.0
        %987 = vmatprep.subr.mxu0 0.0
        %988 = vmatpush2.msra.mxu0 0.0
        %989 = vmatprep.subr.mxu0 0.0
        %990 = vmatpush2.msra.mxu0 0.0
        %991 = vmatprep.subr.mxu0 0.0
        %992 = vmatpush2.msra.mxu0 0.0
        %993 = vmatprep.subr.mxu0 0.0
        %994 = vmatpush2.msra.mxu0 0.0
        %995 = vmatprep.subr.mxu0 0.0
        %996 = vmatpush2.msra.mxu0 0.0
        %997 = vmatprep.subr.mxu0 0.0
        %998 = vmatpush2.msra.mxu0 0.0
        %999 = vmatprep.subr.mxu0 0.0
        %1000 = vmatpush2.msra.mxu0 0.0
        %1001 = vmatprep.subr.mxu0 0.0
        %1002 = vmatpush2.msra.mxu0 0.0
        %1003 = vmatprep.subr.mxu0 0.0
        %1004 = vmatpush2.msra.mxu0 0.0
        %1005 = vmatprep.subr.mxu0 0.0
        %1006 = vmatpush2.msra.mxu0 0.0
        %1007 = vmatprep.subr.mxu0 0.0
        %1008 = vmatpush2.msra.mxu0 0.0
        %1009 = vmatprep.subr.mxu0 0.0
        %1010 = vmatpush2.msra.mxu0 0.0
        %1011 = vmatprep.subr.mxu0 0.0
        %1012 = vmatpush2.msra.mxu0 0.0
        %1013 = vmatprep.subr.mxu0 0.0
        %1014 = vmatpush2.msra.mxu0 0.0
        %1015 = vmatprep.subr.mxu0 0.0
        %1016 = vmatpush2.msra.mxu0 0.0
        %1017 = vmatprep.mubr.f32.mxu0 0.0
        %1018 = vmatmul.mubr.f32.gmra.mxu0 %v951
        %v1019 = vpop.f32.mrf.mxu0
        %v1020 = vadd.f32 0.0, %v1019
        %v1021 = vpop.f32.mrf.mxu0
        %1022 = vdwg.mxu0
        %v1024 = vsel %vm378, %v746, 0
        %1026 = vmatprep.subr.mxu0 0.0
        %1027 = vmatpush1.msra.mxu0 0.0
        %1028 = vmatprep.subr.mxu0 0.0
        %1029 = vmatpush1.msra.mxu0 0.0
        %1030 = vmatprep.subr.mxu0 0.0
        %1031 = vmatpush1.msra.mxu0 0.0
        %1032 = vmatprep.subr.mxu0 0.0
        %1033 = vmatpush1.msra.mxu0 0.0
        %1034 = vmatprep.subr.mxu0 0.0
        %1035 = vmatpush1.msra.mxu0 0.0
        %1036 = vmatprep.subr.mxu0 0.0
        %1037 = vmatpush1.msra.mxu0 0.0
        %1038 = vmatprep.subr.mxu0 0.0
        %1039 = vmatpush1.msra.mxu0 0.0
        %1040 = vmatprep.subr.mxu0 0.0
        %1041 = vmatpush1.msra.mxu0 0.0
        %1042 = vmatprep.subr.mxu0 0.0
        %1043 = vmatpush1.msra.mxu0 0.0
        %1044 = vmatprep.subr.mxu0 0.0
        %1045 = vmatpush1.msra.mxu0 0.0
        %1046 = vmatprep.subr.mxu0 0.0
        %1047 = vmatpush1.msra.mxu0 0.0
        %1048 = vmatprep.subr.mxu0 0.0
        %1049 = vmatpush1.msra.mxu0 0.0
        %1050 = vmatprep.subr.mxu0 0.0
        %1051 = vmatpush1.msra.mxu0 0.0
        %1052 = vmatprep.subr.mxu0 0.0
        %1053 = vmatpush1.msra.mxu0 0.0
        %1054 = vmatprep.subr.mxu0 0.0
        %1055 = vmatpush1.msra.mxu0 0.0
        %1056 = vmatprep.subr.mxu0 0.0
        %1057 = vmatpush1.msra.mxu0 %v377
        %1058 = vmatprep.subr.mxu0 0.0
        %1059 = vmatpush2.msra.mxu0 0.0
        %1060 = vmatprep.subr.mxu0 0.0
        %1061 = vmatpush2.msra.mxu0 0.0
        %1062 = vmatprep.subr.mxu0 0.0
        %1063 = vmatpush2.msra.mxu0 0.0
        %1064 = vmatprep.subr.mxu0 0.0
        %1065 = vmatpush2.msra.mxu0 0.0
        %1066 = vmatprep.subr.mxu0 0.0
        %1067 = vmatpush2.msra.mxu0 0.0
        %1068 = vmatprep.subr.mxu0 0.0
        %1069 = vmatpush2.msra.mxu0 0.0
        %1070 = vmatprep.subr.mxu0 0.0
        %1071 = vmatpush2.msra.mxu0 0.0
        %1072 = vmatprep.subr.mxu0 0.0
        %1073 = vmatpush2.msra.mxu0 0.0
        %1074 = vmatprep.subr.mxu0 0.0
        %1075 = vmatpush2.msra.mxu0 0.0
        %1076 = vmatprep.subr.mxu0 0.0
        %1077 = vmatpush2.msra.mxu0 0.0
        %1078 = vmatprep.subr.mxu0 0.0
        %1079 = vmatpush2.msra.mxu0 0.0
        %1080 = vmatprep.subr.mxu0 0.0
        %1081 = vmatpush2.msra.mxu0 0.0
        %1082 = vmatprep.subr.mxu0 0.0
        %1083 = vmatpush2.msra.mxu0 0.0
        %1084 = vmatprep.subr.mxu0 0.0
        %1085 = vmatpush2.msra.mxu0 0.0
        %1086 = vmatprep.subr.mxu0 0.0
        %1087 = vmatpush2.msra.mxu0 0.0
        %1088 = vmatprep.subr.mxu0 0.0
        %1089 = vmatpush2.msra.mxu0 0.0
        %1090 = vmatprep.mubr.f32.mxu0 0.0
        %1091 = vmatmul.mubr.f32.gmra.mxu0 %v1024
        %v1092 = vpop.f32.mrf.mxu0
        %v1093 = vadd.f32 0.0, %v1092
        %v1094 = vpop.f32.mrf.mxu0
        %1095 = vdwg.mxu0
        %v1096 = vadd.f32 %v800, %v874
        %v1097 = vadd.f32 %v801, %v947
        %v1098 = vadd.f32 %v802, %v1020
        %v1099 = vadd.f32 %v803, %v1093
        %1100 = vst.msk [vmem:[#allocation4] sm:$0xff] %vm378, %v1096
        %1101 = vst.msk [vmem:[#allocation4 + $0x8] sm:$0xff] %vm378, %v1097
        %1102 = vst.msk [vmem:[#allocation4 + $0x10] sm:$0xff] %vm378, %v1098
        %1103 = vst.msk [vmem:[#allocation4 + $0x18] sm:$0xff] %vm378, %v1099
        %1104 = vst.msk [vmem:[#allocation2] sm:$0xff] %vm771, %v699
        %1105 = vst.msk [vmem:[#allocation2 + $0x8] sm:$0xff] %vm771, %v700
        %1106 = vst.msk [vmem:[#allocation2 + $0x10] sm:$0xff] %vm771, %v701
        %1107 = vst.msk [vmem:[#allocation2 + $0x18] sm:$0xff] %vm771, %v702
        // Predicated region
        $region61: #{tpu_custom_call.1} parent=39 // pred_check
          %p1108 = pneg %p348
        $region62: #{tpu_custom_call.1} parent=39 // pred_check_branch
          %1110 = sbr.rel (%p1108) target = $region64
        $region63: #{tpu_custom_call.1} parent=39 // pred_region
          %v1111 = vld [vmem:[#allocation4] sm:$0xff]
          %v1112 = vld [vmem:[#allocation4 + $0x8] sm:$0xff]
          %v1113 = vld [vmem:[#allocation4 + $0x10] sm:$0xff]
          %v1114 = vld [vmem:[#allocation4 + $0x18] sm:$0xff]
          %v1115 = vld [vmem:[#allocation3] sm:$0xff]
          %v1116 = vld [vmem:[#allocation3 + $0x8] sm:$0xff]
          %v1117 = vld [vmem:[#allocation3 + $0x10] sm:$0xff]
          %v1118 = vld [vmem:[#allocation3 + $0x18] sm:$0xff]
          %1120 = vset.pattern.permute.xlu0 0
          %1121 = vperm.xlu0 %1120, %v1115
          %v1122 = vpop.permute.xlu0 %1121
          %1125 = vset.pattern.permute.xlu0 0
          %1126 = vperm.xlu0 %1125, %v1116
          %v1127 = vpop.permute.xlu0 %1126
          %1130 = vset.pattern.permute.xlu0 0
          %1131 = vperm.xlu0 %1130, %v1117
          %v1132 = vpop.permute.xlu0 %1131
          %1135 = vset.pattern.permute.xlu0 0
          %1136 = vperm.xlu0 %1135, %v1118
          %v1137 = vpop.permute.xlu0 %1136
          %v1139 = vrcp.pop %v1122
          %v1140 = vmul.f32 %v1111, %v1139
          %v1141 = vrcp.pop %v1127
          %v1142 = vmul.f32 %v1112, %v1141
          %v1143 = vrcp.pop %v1132
          %v1144 = vmul.f32 %v1113, %v1143
          %v1145 = vrcp.pop %v1137
          %v1146 = vmul.f32 %v1114, %v1145
          %v1147 = vcombine.low %v1140, %v1144
          %v1148 = vcombine.high %v1140, %v1144
          %v1150 = vunpack.c.l.s4 1983009808
          %v1151 = vunpack.c.0.s8 %v1150
          %v1152 = vlaneseq
          %v1153 = vshrl.u32 %v1152, 7
          %v1154 = vsub.s32 %v1151, %v1153
          %v1155 = vrot.slane %v1147, %v1154
          %v1157 = vunpack.c.l.s4 1983009808
          %v1158 = vunpack.c.0.s8 %v1157
          %v1159 = vlaneseq
          %v1160 = vshrl.u32 %v1159, 7
          %v1161 = vsub.s32 %v1158, %v1160
          %v1162 = vrot.slane %v1148, %v1161
          %v1163 = vcombine.low %v1142, %v1146
          %v1164 = vcombine.high %v1142, %v1146
          %v1166 = vunpack.c.l.s4 1983009808
          %v1167 = vunpack.c.0.s8 %v1166
          %v1168 = vlaneseq
          %v1169 = vshrl.u32 %v1168, 7
          %v1170 = vsub.s32 %v1167, %v1169
          %v1171 = vrot.slane %v1163, %v1170
          %v1173 = vunpack.c.l.s4 1983009808
          %v1174 = vunpack.c.0.s8 %v1173
          %v1175 = vlaneseq
          %v1176 = vshrl.u32 %v1175, 7
          %v1177 = vsub.s32 %v1174, %v1176
          %v1178 = vrot.slane %v1164, %v1177
          %v1179 = vcombine.low %v1155, %v1171
          %v1180 = vcombine.high %v1155, %v1171
          %v1182 = vunpack.c.l.s4 1934713408
          %v1183 = vunpack.c.0.s8 %v1182
          %v1184 = vlaneseq
          %v1185 = vshrl.u32 %v1184, 7
          %v1186 = vsub.s32 %v1183, %v1185
          %v1187 = vrot.slane %v1179, %v1186
          %v1189 = vunpack.c.l.s4 1934713408
          %v1190 = vunpack.c.0.s8 %v1189
          %v1191 = vlaneseq
          %v1192 = vshrl.u32 %v1191, 7
          %v1193 = vsub.s32 %v1190, %v1192
          %v1194 = vrot.slane %v1180, %v1193
          %v1195 = vcombine.low %v1162, %v1178
          %v1196 = vcombine.high %v1162, %v1178
          %v1198 = vunpack.c.l.s4 1934713408
          %v1199 = vunpack.c.0.s8 %v1198
          %v1200 = vlaneseq
          %v1201 = vshrl.u32 %v1200, 7
          %v1202 = vsub.s32 %v1199, %v1201
          %v1203 = vrot.slane %v1195, %v1202
          %v1205 = vunpack.c.l.s4 1934713408
          %v1206 = vunpack.c.0.s8 %v1205
          %v1207 = vlaneseq
          %v1208 = vshrl.u32 %v1207, 7
          %v1209 = vsub.s32 %v1206, %v1208
          %v1210 = vrot.slane %v1196, %v1209
          %v1211 = vcombine.high %v1187, 0.0
          %v1212 = vcombine.high %v1194, 0.0
          %v1213 = vcombine.high %v1203, 0.0
          %v1214 = vcombine.high %v1210, 0.0
          %v1215 = vcombine.low %v1187, %v1194
          %v1217 = vunpack.c.l.s4 1983009808
          %v1218 = vunpack.c.0.s8 %v1217
          %v1219 = vlaneseq
          %v1220 = vshrl.u32 %v1219, 7
          %v1221 = vsub.s32 %v1218, %v1220
          %v1222 = vrot.slane %v1215, %v1221
          %v1223 = vcombine.low %v1211, %v1212
          %v1225 = vunpack.c.l.s4 1983009808
          %v1226 = vunpack.c.0.s8 %v1225
          %v1227 = vlaneseq
          %v1228 = vshrl.u32 %v1227, 7
          %v1229 = vsub.s32 %v1226, %v1228
          %v1230 = vrot.slane %v1223, %v1229
          %v1231 = vcombine.low %v1203, %v1210
          %v1233 = vunpack.c.l.s4 1983009808
          %v1234 = vunpack.c.0.s8 %v1233
          %v1235 = vlaneseq
          %v1236 = vshrl.u32 %v1235, 7
          %v1237 = vsub.s32 %v1234, %v1236
          %v1238 = vrot.slane %v1231, %v1237
          %v1239 = vcombine.low %v1213, %v1214
          %v1241 = vunpack.c.l.s4 1983009808
          %v1242 = vunpack.c.0.s8 %v1241
          %v1243 = vlaneseq
          %v1244 = vshrl.u32 %v1243, 7
          %v1245 = vsub.s32 %v1242, %v1244
          %v1246 = vrot.slane %v1239, %v1245
          %v1247 = vcombine.low %v1222, %v1230
          %v1248 = vcombine.high %v1222, %v1230
          %v1250 = vunpack.c.l.s4 1934713408
          %v1251 = vunpack.c.0.s8 %v1250
          %v1252 = vlaneseq
          %v1253 = vshrl.u32 %v1252, 7
          %v1254 = vsub.s32 %v1251, %v1253
          %v1255 = vrot.slane %v1247, %v1254
          %v1257 = vunpack.c.l.s4 1934713408
          %v1258 = vunpack.c.0.s8 %v1257
          %v1259 = vlaneseq
          %v1260 = vshrl.u32 %v1259, 7
          %v1261 = vsub.s32 %v1258, %v1260
          %v1262 = vrot.slane %v1248, %v1261
          %v1263 = vcombine.low %v1238, %v1246
          %v1264 = vcombine.high %v1238, %v1246
          %v1266 = vunpack.c.l.s4 1934713408
          %v1267 = vunpack.c.0.s8 %v1266
          %v1268 = vlaneseq
          %v1269 = vshrl.u32 %v1268, 7
          %v1270 = vsub.s32 %v1267, %v1269
          %v1271 = vrot.slane %v1263, %v1270
          %v1273 = vunpack.c.l.s4 1934713408
          %v1274 = vunpack.c.0.s8 %v1273
          %v1275 = vlaneseq
          %v1276 = vshrl.u32 %v1275, 7
          %v1277 = vsub.s32 %v1274, %v1276
          %v1278 = vrot.slane %v1264, %v1277
          %v1279 = vcombine.low %v1255, %v1271
          %v1280 = vcombine.high %v1255, %v1271
          %v1281 = vcombine.low %v1262, %v1278
          %v1282 = vcombine.high %v1262, %v1278
          %1284 = vrot.lane.b32.xlu0 %v1280, 8
          %v1285 = vpop.permute.xlu0 %1284
          %1288 = vrot.lane.b32.xlu0 %v1281, 16
          %v1289 = vpop.permute.xlu0 %1288
          %1292 = vrot.lane.b32.xlu0 %v1282, 24
          %v1293 = vpop.permute.xlu0 %1292
          %v1295 = vsel %vm378, %v1279, %v1285
          %vm1296 = vcmask 130048
          %v1297 = vsel %vm1296, %v1295, %v1289
          %vm1298 = vcmask 195584
          %v1299 = vsel %vm1298, %v1297, %v1293
          %v1300 = vld [vmem:[#allocation11] sm:$0xff]
          %v1301 = vld [vmem:[#allocation11 + $0x8] sm:$0xff]
          %v1302 = vld [vmem:[#allocation11 + $0x10] sm:$0xff]
          %v1303 = vld [vmem:[#allocation11 + $0x18] sm:$0xff]
          %v1304 = vld [vmem:[%s4] sm:$0x1]
          %v1306 = vlaneseq
          %v1307 = vshrl.u32 %v1306, 7
          %v1308 = vsub.s32 0, %v1307
          %v1309 = vrot.slane %v1304, %v1308
          %vm1311 = vcmask 261120
          %v1313 = vsel %vm1311, %v1299, 0
          %1315 = vmatprep.subr.mxu0 0.0
          %1316 = vmatpush1.msra.mxu0 0.0
          %1317 = vmatprep.subr.mxu0 0.0
          %1318 = vmatpush1.msra.mxu0 0.0
          %1319 = vmatprep.subr.mxu0 0.0
          %1320 = vmatpush1.msra.mxu0 0.0
          %1321 = vmatprep.subr.mxu0 0.0
          %1322 = vmatpush1.msra.mxu0 0.0
          %1323 = vmatprep.subr.mxu0 0.0
          %1324 = vmatpush1.msra.mxu0 0.0
          %1325 = vmatprep.subr.mxu0 0.0
          %1326 = vmatpush1.msra.mxu0 0.0
          %1327 = vmatprep.subr.mxu0 0.0
          %1328 = vmatpush1.msra.mxu0 0.0
          %1329 = vmatprep.subr.mxu0 0.0
          %1330 = vmatpush1.msra.mxu0 0.0
          %1331 = vmatprep.subr.mxu0 0.0
          %1332 = vmatpush1.msra.mxu0 0.0
          %1333 = vmatprep.subr.mxu0 0.0
          %1334 = vmatpush1.msra.mxu0 0.0
          %1335 = vmatprep.subr.mxu0 0.0
          %1336 = vmatpush1.msra.mxu0 0.0
          %1337 = vmatprep.subr.mxu0 0.0
          %1338 = vmatpush1.msra.mxu0 0.0
          %1339 = vmatprep.subr.mxu0 0.0
          %1340 = vmatpush1.msra.mxu0 %v1303
          %1341 = vmatprep.subr.mxu0 0.0
          %1342 = vmatpush1.msra.mxu0 %v1302
          %1343 = vmatprep.subr.mxu0 0.0
          %1344 = vmatpush1.msra.mxu0 %v1301
          %1345 = vmatprep.subr.mxu0 0.0
          %1346 = vmatpush1.msra.mxu0 %v1300
          %1347 = vmatprep.subr.mxu0 0.0
          %1348 = vmatpush2.msra.mxu0 0.0
          %1349 = vmatprep.subr.mxu0 0.0
          %1350 = vmatpush2.msra.mxu0 0.0
          %1351 = vmatprep.subr.mxu0 0.0
          %1352 = vmatpush2.msra.mxu0 0.0
          %1353 = vmatprep.subr.mxu0 0.0
          %1354 = vmatpush2.msra.mxu0 0.0
          %1355 = vmatprep.subr.mxu0 0.0
          %1356 = vmatpush2.msra.mxu0 0.0
          %1357 = vmatprep.subr.mxu0 0.0
          %1358 = vmatpush2.msra.mxu0 0.0
          %1359 = vmatprep.subr.mxu0 0.0
          %1360 = vmatpush2.msra.mxu0 0.0
          %1361 = vmatprep.subr.mxu0 0.0
          %1362 = vmatpush2.msra.mxu0 0.0
          %1363 = vmatprep.subr.mxu0 0.0
          %1364 = vmatpush2.msra.mxu0 0.0
          %1365 = vmatprep.subr.mxu0 0.0
          %1366 = vmatpush2.msra.mxu0 0.0
          %1367 = vmatprep.subr.mxu0 0.0
          %1368 = vmatpush2.msra.mxu0 0.0
          %1369 = vmatprep.subr.mxu0 0.0
          %1370 = vmatpush2.msra.mxu0 0.0
          %1371 = vmatprep.subr.mxu0 0.0
          %1372 = vmatpush2.msra.mxu0 0.0
          %1373 = vmatprep.subr.mxu0 0.0
          %1374 = vmatpush2.msra.mxu0 0.0
          %1375 = vmatprep.subr.mxu0 0.0
          %1376 = vmatpush2.msra.mxu0 0.0
          %1377 = vmatprep.subr.mxu0 0.0
          %1378 = vmatpush2.msra.mxu0 0.0
          %1379 = vmatprep.mubr.f32.mxu0 0.0
          %1380 = vmatmul.mubr.f32.gmra.mxu0 %v1313
          %v1381 = vpop.f32.mrf.mxu0
          %v1382 = vadd.f32 %v1309, %v1381
          %v1383 = vpop.f32.mrf.mxu0
          %1384 = vdwg.mxu0
          %1385 = vst.msk [vmem:[%s347] sm:$0xff] %vm1311, %v1382
        $region64: #{tpu_custom_call.1} parent=39 // pred_fallthru
          _
        %s1386 = sand.u32 %s179, 1
        %s1387 = scalar_lea.sflag [#allocation7], %s1386
        %s1388 = sand.u32 %s179, 1
        %s1389 = smul.addr %s1388, 8
        %s1390 = scalar_lea.vmem [#allocation13], %s1389
        // Predicated region
        $region65: #{tpu_custom_call.1} parent=39 // pred_check
          %p1391 = pneg %p189
        $region66: #{tpu_custom_call.1} parent=39 // pred_check_branch
          %1393 = sbr.rel (%p1391) target = $region68
        $region67: #{tpu_custom_call.1} parent=39 // pred_region
          %s1395 = ssub.s32 128, 128
          %1396 = vsyncadd %s1387, %s1395
          %s1397 = sadd.s32 %s30, %s29
          %s1398 = smul.addr %s1397, 128
          %s1399 = scalar_lea.hbm %s5, %s1398
          %s1401 = sshll.u32 %s1390, 4
          %s1402 = int_to_ptr.vmem [resolvable:$true] %s1401
          %1404 = dma.vmem_to_hbm [thread:$0]  %s1402, 128, %s1399, %s1387
        $region68: #{tpu_custom_call.1} parent=39 // pred_fallthru
          _
      $region40: #{tpu_custom_call.1} parent=5 // pred_fallthru
        _
      %p1405 = scmp.le.s32.totalorder 2, %s19
      // Predicated region
      $region69: #{tpu_custom_call.1} parent=5 // pred_check
        %p1406 = pneg %p1405
      $region70: #{tpu_custom_call.1} parent=5 // pred_check_branch
        %1408 = sbr.rel (%p1406) target = $region72
      $region71: #{tpu_custom_call.1} parent=5 // pred_region
        %s1409 = ssub.s32 %s19, 2
        // Predicated region
        $region73: #{tpu_custom_call.1} parent=71 // pred_check
          %p1410 = pneg %p195
        $region74: #{tpu_custom_call.1} parent=71 // pred_check_branch
          %1412 = sbr.rel (%p1410) target = $region76
        $region75: #{tpu_custom_call.1} parent=71 // pred_region
          %s1413 = sand.u32 %s180, 1
          %s1414 = scalar_lea.sflag [#allocation7], %s1413
          %s1415 = sand.u32 %s180, 1
          %s1416 = smul.addr %s1415, 8
          %s1417 = scalar_lea.vmem [#allocation13], %s1416
          %1418 = dma.done %s1414, 128
        $region76: #{tpu_custom_call.1} parent=71 // pred_fallthru
          _
      $region72: #{tpu_custom_call.1} parent=5 // pred_fallthru
        _
    $region6: #{tpu_custom_call.1} parent=1 // loop_footer
      %s23 = sadd.s32 1, %s19
    $region7: #{tpu_custom_call.1} parent=1 // loop_footer_branch
      %18 = sbr.rel target = $region3
    $region8: #{tpu_custom_call.1} parent=1 // loop_exit
      _
    %1419 = vsyncpa [#allocation6], 1
    %s1420 = scalar_lea.sflag [#allocation6], 1
    %1421 = vsyncpa %s1420, 1
    %1422 = vsyncpa [#allocation9], 1
    %s1423 = scalar_lea.sflag [#allocation9], 1
    %1424 = vsyncpa %s1423, 1
    %1425 = vsyncpa [#allocation12], 1
    %1426 = vsyncpa [#allocation7], 1
    %s1427 = scalar_lea.sflag [#allocation7], 1
    %1428 = vsyncpa %s1427, 1

</llo_original>
